<compile_context>
chip_gen: v7x
topology: tpu7x:2x2x1
jax: 0.10.0
libtpu: 0.0.40
codegen_flags: <defaults>
</compile_context>

<pallas_src>
import math
import numpy as np
import jax
import jax.numpy as jnp
from jax.experimental import pallas as pl
from jax.experimental.pallas import tpu as pltpu

# ---- config mirroring the module's __init__ (synthetic, deterministic) ----
N_AGENTS = 4          # args.n_agents
OBS_DIM = 16          # scheme['obs']['vshape']
GRU_HIDDEN = 32       # args.gru_hidden_dim
ATTN_DIM = 16         # args.attention_dim
STATE_DIM = 64        # int(np.prod(args.state_shape))
HYPER_HIDDEN = 32     # args.hyper_hidden_dim


# ----------------------------- fused kernel -----------------------------
def fused_kernel(obs_ref, aq_ref, st_ref,
                 w1t_ref, b1t_ref, w2t_ref, b2t_ref, wqkt_ref,
                 wc1t_ref, bc1t_ref, w2pt_ref, b2pt_ref,
                 out_ref):
    f32 = jnp.float32
    bf16 = jnp.bfloat16

    # ---- per-agent obs encoder, block-diag packed, transposed: (feat, TB) ----
    x = obs_ref[...]                                                   # bf16 (64, TB)
    h1 = jnp.maximum(
        jnp.dot(w1t_ref[...], x, preferred_element_type=f32) + b1t_ref[...], 0.0)
    enc = jnp.maximum(
        jnp.dot(w2t_ref[...], h1.astype(bf16), preferred_element_type=f32)
        + b2t_ref[...], 0.0)                                           # (128, TB)
    qk = jnp.dot(wqkt_ref[...], enc.astype(bf16),
                 preferred_element_type=f32)                           # (128, TB)
    # layout: rows [32a, 32a+16) = q_a, rows [32a+16, 32a+32) = k_a

    # ---- hypernetwork (weight & const branches fused), transposed ----
    s = st_ref[...]                                                    # bf16 (64, TB)
    h_all = jnp.maximum(
        jnp.dot(wc1t_ref[...], s, preferred_element_type=f32) + bc1t_ref[...], 0.0)
    res = jnp.dot(w2pt_ref[...], h_all.astype(bf16),
                  preferred_element_type=f32) + b2pt_ref[...]          # (8, TB)
    hyper_w = jnp.abs(res[:N_AGENTS, :])                               # (4, TB)
    hyper_c = res[N_AGENTS:N_AGENTS + 1, :]                            # (1, TB)

    aq = aq_ref[...]                                                   # f32 (4, TB)
    inv_sqrt = 1.0 / math.sqrt(float(ATTN_DIM))

    # ---- attention + mixing, all lane-dense (never a (.,4,16) intermediate) ----
    acc = hyper_c                                                      # (1, TB)
    for i in range(N_AGENTS):
        qi = qk[2 * ATTN_DIM * i: 2 * ATTN_DIM * i + ATTN_DIM, :]      # (16, TB)
        s_ij = []
        for j in range(N_AGENTS):
            kj = qk[2 * ATTN_DIM * j + ATTN_DIM: 2 * ATTN_DIM * (j + 1), :]
            s_ij.append(jnp.sum(qi * kj, axis=0, keepdims=True) * inv_sqrt)
        m = s_ij[0]
        for sv in s_ij[1:]:
            m = jnp.maximum(m, sv)
        e = [jnp.exp(sv - m) for sv in s_ij]                           # (1, TB) each
        denom = e[0]
        num = aq[0:1, :] * e[0]
        for j in range(1, N_AGENTS):
            denom = denom + e[j]
            num = num + aq[j:j + 1, :] * e[j]
        inv_denom = pl.reciprocal(denom, approx=True)                  # denom in [1, N]
        x_i = jnp.maximum(num * inv_denom, 0.0)                        # (1, TB)
        acc = acc + x_i * hyper_w[i:i + 1, :]

    out_ref[...] = acc                                                 # lane-dense store


# ------------------------------- wrapper -------------------------------
def _choose_tiling(bt, max_tile=1024):
    """Pad BT to a multiple of 128; TILE_B = largest multiple of 128 (<= max_tile)
    dividing the padded BT.  Small problems get a single grid step."""
    bt_pad = ((bt + 127) // 128) * 128
    tile = 128
    t = 128
    while t <= min(bt_pad, max_tile):
        if bt_pad % t == 0:
            tile = t
        t += 128
    return bt_pad, tile, bt_pad // tile


def ng2a_mixer_forward(agent_qs, states, obs, packed):
    B, T = obs.shape[0], obs.shape[1]
    BT = B * T
    bt_pad, TILE_B, G = _choose_tiling(BT)

    # Transpose so BT sits on the lane axis; pad lanes to a multiple of 128.
    obs_t = obs.reshape(BT, N_AGENTS * OBS_DIM).T                      # (64, BT)
    st_t = states.reshape(BT, STATE_DIM).T                             # (64, BT)
    aq_t = agent_qs.reshape(BT, N_AGENTS).T                            # (4, BT)
    pad = bt_pad - BT
    if pad:
        obs_t = jnp.pad(obs_t, ((0, 0), (0, pad)))
        st_t = jnp.pad(st_t, ((0, 0), (0, pad)))
        aq_t = jnp.pad(aq_t, ((0, 0), (0, pad)))
    obs_t = obs_t.astype(jnp.bfloat16)
    st_t = st_t.astype(jnp.bfloat16)
    aq_t = aq_t.astype(jnp.float32)

    def batch_spec(rows):
        return pl.BlockSpec((rows, TILE_B), lambda i: (0, i))

    def full2d(arr):
        return pl.BlockSpec(arr.shape, lambda i: (0, 0))

    out = pl.pallas_call(
        fused_kernel,
        out_shape=jax.ShapeDtypeStruct((1, bt_pad), jnp.float32),
        grid=(G,),
        in_specs=[batch_spec(N_AGENTS * OBS_DIM),
                  batch_spec(N_AGENTS),
                  batch_spec(STATE_DIM),
                  full2d(packed['w1t']), full2d(packed['b1t']),
                  full2d(packed['w2t']), full2d(packed['b2t']),
                  full2d(packed['wqkt']),
                  full2d(packed['wc1t']), full2d(packed['bc1t']),
                  full2d(packed['w2pt']), full2d(packed['b2pt'])],
        out_specs=pl.BlockSpec((1, TILE_B), lambda i: (0, i)),
        compiler_params=pltpu.CompilerParams(dimension_semantics=("parallel",)),
    )(obs_t, aq_t, st_t,
      packed['w1t'], packed['b1t'], packed['w2t'], packed['b2t'], packed['wqkt'],
      packed['wc1t'], packed['bc1t'], packed['w2pt'], packed['b2pt'])

    return out[0, :BT].reshape(B, T, 1)


# --------------------------- params + packing ---------------------------
def init_params(key):
    def linear(k, fan_in, fan_out):
        k1, k2 = jax.random.split(k)
        bound = 1.0 / math.sqrt(fan_in)
        w = jax.random.uniform(k1, (fan_in, fan_out), jnp.float32, -bound, bound)
        b = jax.random.uniform(k2, (1, fan_out), jnp.float32, -bound, bound)
        return w, b

    keys = jax.random.split(key, 8)
    p = {}
    p['w1'], p['b1'] = linear(keys[0], OBS_DIM, 2 * GRU_HIDDEN)
    p['w2'], p['b2'] = linear(keys[1], 2 * GRU_HIDDEN, GRU_HIDDEN)
    p['wq'], _ = linear(keys[2], GRU_HIDDEN, ATTN_DIM)    # bias=False
    p['wk'], _ = linear(keys[3], GRU_HIDDEN, ATTN_DIM)    # bias=False
    p['hw1'], p['hb1'] = linear(keys[4], STATE_DIM, HYPER_HIDDEN)
    p['hw2'], p['hb2'] = linear(keys[5], HYPER_HIDDEN, N_AGENTS)
    p['cw1'], p['cb1'] = linear(keys[6], STATE_DIM, HYPER_HIDDEN)
    p['cw2'], p['cb2'] = linear(keys[7], HYPER_HIDDEN, 1)
    return p


def pack_params(p):
    """Block-diagonal per-agent packing of the shared encoder + fused hypernet,
    then transpose everything so kernel GEMMs are W^T @ X^T (BT on lanes).
    MXU operands in bf16; biases kept f32 (added after f32 accumulation)."""
    mm = jnp.bfloat16
    GH = GRU_HIDDEN

    w1bd = jnp.zeros((N_AGENTS * OBS_DIM, N_AGENTS * 2 * GH), jnp.float32)
    w2bd = jnp.zeros((N_AGENTS * 2 * GH, N_AGENTS * GH), jnp.float32)
    wqkbd = jnp.zeros((N_AGENTS * GH, N_AGENTS * 2 * ATTN_DIM), jnp.float32)
    wqk = jnp.concatenate([p['wq'], p['wk']], axis=1)                  # (32, 32)
    for a in range(N_AGENTS):
        w1bd = w1bd.at[a * OBS_DIM:(a + 1) * OBS_DIM,
                       a * 2 * GH:(a + 1) * 2 * GH].set(p['w1'])
        w2bd = w2bd.at[a * 2 * GH:(a + 1) * 2 * GH,
                       a * GH:(a + 1) * GH].set(p['w2'])
        wqkbd = wqkbd.at[a * GH:(a + 1) * GH,
                         a * 2 * ATTN_DIM:(a + 1) * 2 * ATTN_DIM].set(wqk)
    b1bd = jnp.tile(p['b1'], (1, N_AGENTS))                            # (1, 256)
    b2bd = jnp.tile(p['b2'], (1, N_AGENTS))                            # (1, 128)

    wc1 = jnp.concatenate([p['hw1'], p['cw1']], axis=1)                # (64, 64)
    bc1 = jnp.concatenate([p['hb1'], p['cb1']], axis=1)                # (1, 64)
    # block-diagonal hyper second layer, output padded to 8 rows for clean tiling
    w2p = jnp.zeros((2 * HYPER_HIDDEN, 8), jnp.float32)
    w2p = w2p.at[:HYPER_HIDDEN, :N_AGENTS].set(p['hw2'])
    w2p = w2p.at[HYPER_HIDDEN:, N_AGENTS:N_AGENTS + 1].set(p['cw2'])
    b2p = jnp.zeros((1, 8), jnp.float32)
    b2p = b2p.at[:, :N_AGENTS].set(p['hb2'])
    b2p = b2p.at[:, N_AGENTS:N_AGENTS + 1].set(p['cb2'])

    T = jnp.transpose
    return dict(
        w1t=T(w1bd).astype(mm), b1t=T(b1bd),       # (256, 64) bf16, (256, 1) f32
        w2t=T(w2bd).astype(mm), b2t=T(b2bd),       # (128, 256),     (128, 1)
        wqkt=T(wqkbd).astype(mm),                  # (128, 128)
        wc1t=T(wc1).astype(mm), bc1t=T(bc1),       # (64, 64),       (64, 1)
        w2pt=T(w2p).astype(mm), b2pt=T(b2p))       # (8, 64),        (8, 1)


# ------------------------------ reference ------------------------------
def ref_forward(agent_qs, states, obs, p):
    B, T = obs.shape[0], obs.shape[1]
    obs_f = obs.reshape(-1, OBS_DIM)
    st = states.reshape(-1, STATE_DIM)
    aq = agent_qs.reshape(-1, N_AGENTS, 1)
    h1 = jax.nn.relu(obs_f @ p['w1'] + p['b1'])
    enc = jax.nn.relu(h1 @ p['w2'] + p['b2'])
    q = (enc @ p['wq']).reshape(-1, N_AGENTS, ATTN_DIM)
    k = jnp.transpose((enc @ p['wk']).reshape(-1, N_AGENTS, ATTN_DIM), (0, 2, 1))
    aq_t = jnp.transpose(aq, (0, 2, 1))
    score = jnp.einsum('bij,bjk->bik', q, k) / math.sqrt(ATTN_DIM)
    soft = jax.nn.softmax(score, axis=-1)
    hard = jnp.ones_like(soft)                                    # hard=False branch
    x = jax.nn.relu(jnp.sum(aq_t * soft * hard, axis=-1)).reshape(-1, 1, N_AGENTS)
    hw = jnp.abs((jax.nn.relu(st @ p['hw1'] + p['hb1']) @ p['hw2'] + p['hb2'])
                 ).reshape(-1, N_AGENTS, 1)
    hc = (jax.nn.relu(st @ p['cw1'] + p['cb1']) @ p['cw2'] + p['cb2']).reshape(-1, 1, 1)
    q_tot = jnp.einsum('bij,bjk->bik', x, hw) + hc
    return q_tot.reshape(B, T, 1)


if __name__ == "__main__":
    key = jax.random.PRNGKey(0)
    kp, k1, k2, k3 = jax.random.split(key, 4)
    params = init_params(kp)
    packed = pack_params(params)

    B, T = 2, 8
    agent_qs = jax.random.normal(k1, (B, T, N_AGENTS), jnp.float32)
    states = jax.random.normal(k2, (B, T, STATE_DIM), jnp.float32)
    obs = jax.random.normal(k3, (B, T, N_AGENTS, OBS_DIM), jnp.float32)

    fwd = jax.jit(ng2a_mixer_forward)
    out = fwd(agent_qs, states, obs, packed)
    jax.block_until_ready(out)

    ref = ref_forward(agent_qs, states, obs, params)
    # tolerance accounts for bf16 MXU operands (f32 accumulation) + approx reciprocal
    np.testing.assert_allclose(np.asarray(out), np.asarray(ref), rtol=3e-2, atol=3e-2)
    print("KERNEL_OK")
</pallas_src>

<mosaic_0001>
module attributes {stable_mosaic.version = 11 : i64} {
  func.func @fused_kernel(%arg0: i32, %arg1: memref<64x128xbf16, #tpu.memory_space<vmem>>, %arg2: memref<4x128xf32, #tpu.memory_space<vmem>>, %arg3: memref<64x128xbf16, #tpu.memory_space<vmem>>, %arg4: memref<256x64xbf16, #tpu.memory_space<vmem>>, %arg5: memref<256x1xf32, #tpu.memory_space<vmem>>, %arg6: memref<128x256xbf16, #tpu.memory_space<vmem>>, %arg7: memref<128x1xf32, #tpu.memory_space<vmem>>, %arg8: memref<128x128xbf16, #tpu.memory_space<vmem>>, %arg9: memref<64x64xbf16, #tpu.memory_space<vmem>>, %arg10: memref<64x1xf32, #tpu.memory_space<vmem>>, %arg11: memref<8x64xbf16, #tpu.memory_space<vmem>>, %arg12: memref<8x1xf32, #tpu.memory_space<vmem>>, %arg13: memref<1x128xf32, #tpu.memory_space<vmem>>) attributes {dimension_semantics = [#tpu.dimension_semantics<parallel>], iteration_bounds = array<i64: 1>, scalar_prefetch = 0 : i64, scratch_operands = 0 : i64, tpu.core_type = #tpu.core_type<tc>, window_params = [{transform_indices = @transform_0, window_bounds = array<i64: 64, 128>}, {transform_indices = @transform_1, window_bounds = array<i64: 4, 128>}, {transform_indices = @transform_2, window_bounds = array<i64: 64, 128>}, {pipeline_mode = #tpu.pipeline_mode<synchronous>, transform_indices = @transform_3, window_bounds = array<i64: 256, 64>}, {pipeline_mode = #tpu.pipeline_mode<synchronous>, transform_indices = @transform_4, window_bounds = array<i64: 256, 1>}, {pipeline_mode = #tpu.pipeline_mode<synchronous>, transform_indices = @transform_5, window_bounds = array<i64: 128, 256>}, {pipeline_mode = #tpu.pipeline_mode<synchronous>, transform_indices = @transform_6, window_bounds = array<i64: 128, 1>}, {pipeline_mode = #tpu.pipeline_mode<synchronous>, transform_indices = @transform_7, window_bounds = array<i64: 128, 128>}, {pipeline_mode = #tpu.pipeline_mode<synchronous>, transform_indices = @transform_8, window_bounds = array<i64: 64, 64>}, {pipeline_mode = #tpu.pipeline_mode<synchronous>, transform_indices = @transform_9, window_bounds = array<i64: 64, 1>}, {pipeline_mode = #tpu.pipeline_mode<synchronous>, transform_indices = @transform_10, window_bounds = array<i64: 8, 64>}, {pipeline_mode = #tpu.pipeline_mode<synchronous>, transform_indices = @transform_11, window_bounds = array<i64: 8, 1>}, {transform_indices = @transform_12, window_bounds = array<i64: 1, 128>}]} {
    %c0 = arith.constant 0 : index
    %c0_0 = arith.constant 0 : index
    %0 = vector.load %arg1[%c0, %c0_0] : memref<64x128xbf16, #tpu.memory_space<vmem>>, vector<64x128xbf16>
    %c0_1 = arith.constant 0 : index
    %c0_2 = arith.constant 0 : index
    %1 = vector.load %arg4[%c0_1, %c0_2] : memref<256x64xbf16, #tpu.memory_space<vmem>>, vector<256x64xbf16>
    %cst = arith.constant dense<0.000000e+00> : vector<256x128xf32>
    %2 = tpu.matmul %1, %0, %cst {dimension_numbers = #tpu.dot_dimension_numbers<[1], [0], [0], [1], [0, 0, 1, 1], [], []>} : vector<256x64xbf16>, vector<64x128xbf16>, vector<256x128xf32> -> vector<256x128xf32>
    %c0_3 = arith.constant 0 : index
    %c0_4 = arith.constant 0 : index
    %3 = vector.load %arg5[%c0_3, %c0_4] : memref<256x1xf32, #tpu.memory_space<vmem>>, vector<256x1xf32>
    %4 = vector.broadcast %3 : vector<256x1xf32> to vector<256x128xf32>
    %5 = arith.addf %2, %4 : vector<256x128xf32>
    %cst_5 = arith.constant 0.000000e+00 : f32
    %6 = vector.broadcast %cst_5 : f32 to vector<256x128xf32>
    %7 = arith.maximumf %5, %6 : vector<256x128xf32>
    %c0_6 = arith.constant 0 : index
    %c0_7 = arith.constant 0 : index
    %8 = vector.load %arg6[%c0_6, %c0_7] : memref<128x256xbf16, #tpu.memory_space<vmem>>, vector<128x256xbf16>
    %9 = arith.truncf %7 : vector<256x128xf32> to vector<256x128xbf16>
    %cst_8 = arith.constant dense<0.000000e+00> : vector<128x128xf32>
    %10 = tpu.matmul %8, %9, %cst_8 {dimension_numbers = #tpu.dot_dimension_numbers<[1], [0], [0], [1], [0, 0, 1, 1], [], []>} : vector<128x256xbf16>, vector<256x128xbf16>, vector<128x128xf32> -> vector<128x128xf32>
    %c0_9 = arith.constant 0 : index
    %c0_10 = arith.constant 0 : index
    %11 = vector.load %arg7[%c0_9, %c0_10] : memref<128x1xf32, #tpu.memory_space<vmem>>, vector<128x1xf32>
    %12 = vector.broadcast %11 : vector<128x1xf32> to vector<128x128xf32>
    %13 = arith.addf %10, %12 : vector<128x128xf32>
    %cst_11 = arith.constant 0.000000e+00 : f32
    %14 = vector.broadcast %cst_11 : f32 to vector<128x128xf32>
    %15 = arith.maximumf %13, %14 : vector<128x128xf32>
    %c0_12 = arith.constant 0 : index
    %c0_13 = arith.constant 0 : index
    %16 = vector.load %arg8[%c0_12, %c0_13] : memref<128x128xbf16, #tpu.memory_space<vmem>>, vector<128x128xbf16>
    %17 = arith.truncf %15 : vector<128x128xf32> to vector<128x128xbf16>
    %cst_14 = arith.constant dense<0.000000e+00> : vector<128x128xf32>
    %18 = tpu.matmul %16, %17, %cst_14 {dimension_numbers = #tpu.dot_dimension_numbers<[1], [0], [0], [1], [0, 0, 1, 1], [], []>} : vector<128x128xbf16>, vector<128x128xbf16>, vector<128x128xf32> -> vector<128x128xf32>
    %c0_15 = arith.constant 0 : index
    %c0_16 = arith.constant 0 : index
    %19 = vector.load %arg3[%c0_15, %c0_16] : memref<64x128xbf16, #tpu.memory_space<vmem>>, vector<64x128xbf16>
    %c0_17 = arith.constant 0 : index
    %c0_18 = arith.constant 0 : index
    %20 = vector.load %arg9[%c0_17, %c0_18] : memref<64x64xbf16, #tpu.memory_space<vmem>>, vector<64x64xbf16>
    %cst_19 = arith.constant dense<0.000000e+00> : vector<64x128xf32>
    %21 = tpu.matmul %20, %19, %cst_19 {dimension_numbers = #tpu.dot_dimension_numbers<[1], [0], [0], [1], [0, 0, 1, 1], [], []>} : vector<64x64xbf16>, vector<64x128xbf16>, vector<64x128xf32> -> vector<64x128xf32>
    %c0_20 = arith.constant 0 : index
    %c0_21 = arith.constant 0 : index
    %22 = vector.load %arg10[%c0_20, %c0_21] : memref<64x1xf32, #tpu.memory_space<vmem>>, vector<64x1xf32>
    %23 = vector.broadcast %22 : vector<64x1xf32> to vector<64x128xf32>
    %24 = arith.addf %21, %23 : vector<64x128xf32>
    %cst_22 = arith.constant 0.000000e+00 : f32
    %25 = vector.broadcast %cst_22 : f32 to vector<64x128xf32>
    %26 = arith.maximumf %24, %25 : vector<64x128xf32>
    %c0_23 = arith.constant 0 : index
    %c0_24 = arith.constant 0 : index
    %27 = vector.load %arg11[%c0_23, %c0_24] : memref<8x64xbf16, #tpu.memory_space<vmem>>, vector<8x64xbf16>
    %28 = arith.truncf %26 : vector<64x128xf32> to vector<64x128xbf16>
    %cst_25 = arith.constant dense<0.000000e+00> : vector<8x128xf32>
    %29 = tpu.matmul %27, %28, %cst_25 {dimension_numbers = #tpu.dot_dimension_numbers<[1], [0], [0], [1], [0, 0, 1, 1], [], []>} : vector<8x64xbf16>, vector<64x128xbf16>, vector<8x128xf32> -> vector<8x128xf32>
    %c0_26 = arith.constant 0 : index
    %c0_27 = arith.constant 0 : index
    %30 = vector.load %arg12[%c0_26, %c0_27] : memref<8x1xf32, #tpu.memory_space<vmem>>, vector<8x1xf32>
    %31 = vector.broadcast %30 : vector<8x1xf32> to vector<8x128xf32>
    %32 = arith.addf %29, %31 : vector<8x128xf32>
    %33 = vector.extract_strided_slice %32 {offsets = [0, 0], sizes = [4, 128], strides = [1, 1]} : vector<8x128xf32> to vector<4x128xf32>
    %34 = math.absf %33 : vector<4x128xf32>
    %35 = vector.extract_strided_slice %32 {offsets = [4, 0], sizes = [1, 128], strides = [1, 1]} : vector<8x128xf32> to vector<1x128xf32>
    %c0_28 = arith.constant 0 : index
    %c0_29 = arith.constant 0 : index
    %36 = vector.load %arg2[%c0_28, %c0_29] : memref<4x128xf32, #tpu.memory_space<vmem>>, vector<4x128xf32>
    %37 = vector.extract_strided_slice %18 {offsets = [0, 0], sizes = [16, 128], strides = [1, 1]} : vector<128x128xf32> to vector<16x128xf32>
    %38 = vector.extract_strided_slice %18 {offsets = [16, 0], sizes = [16, 128], strides = [1, 1]} : vector<128x128xf32> to vector<16x128xf32>
    %39 = arith.mulf %37, %38 : vector<16x128xf32>
    %cst_30 = arith.constant dense<0.000000e+00> : vector<128xf32>
    %40 = vector.multi_reduction <add>, %39, %cst_30 [0] : vector<16x128xf32> to vector<128xf32>
    %41 = vector.shape_cast %40 : vector<128xf32> to vector<1x128xf32>
    %cst_31 = arith.constant 2.500000e-01 : f32
    %42 = vector.broadcast %cst_31 : f32 to vector<1x128xf32>
    %43 = arith.mulf %41, %42 : vector<1x128xf32>
    %44 = vector.extract_strided_slice %18 {offsets = [48, 0], sizes = [16, 128], strides = [1, 1]} : vector<128x128xf32> to vector<16x128xf32>
    %45 = arith.mulf %37, %44 : vector<16x128xf32>
    %cst_32 = arith.constant dense<0.000000e+00> : vector<128xf32>
    %46 = vector.multi_reduction <add>, %45, %cst_32 [0] : vector<16x128xf32> to vector<128xf32>
    %47 = vector.shape_cast %46 : vector<128xf32> to vector<1x128xf32>
    %cst_33 = arith.constant 2.500000e-01 : f32
    %48 = vector.broadcast %cst_33 : f32 to vector<1x128xf32>
    %49 = arith.mulf %47, %48 : vector<1x128xf32>
    %50 = vector.extract_strided_slice %18 {offsets = [80, 0], sizes = [16, 128], strides = [1, 1]} : vector<128x128xf32> to vector<16x128xf32>
    %51 = arith.mulf %37, %50 : vector<16x128xf32>
    %cst_34 = arith.constant dense<0.000000e+00> : vector<128xf32>
    %52 = vector.multi_reduction <add>, %51, %cst_34 [0] : vector<16x128xf32> to vector<128xf32>
    %53 = vector.shape_cast %52 : vector<128xf32> to vector<1x128xf32>
    %cst_35 = arith.constant 2.500000e-01 : f32
    %54 = vector.broadcast %cst_35 : f32 to vector<1x128xf32>
    %55 = arith.mulf %53, %54 : vector<1x128xf32>
    %56 = vector.extract_strided_slice %18 {offsets = [112, 0], sizes = [16, 128], strides = [1, 1]} : vector<128x128xf32> to vector<16x128xf32>
    %57 = arith.mulf %37, %56 : vector<16x128xf32>
    %cst_36 = arith.constant dense<0.000000e+00> : vector<128xf32>
    %58 = vector.multi_reduction <add>, %57, %cst_36 [0] : vector<16x128xf32> to vector<128xf32>
    %59 = vector.shape_cast %58 : vector<128xf32> to vector<1x128xf32>
    %cst_37 = arith.constant 2.500000e-01 : f32
    %60 = vector.broadcast %cst_37 : f32 to vector<1x128xf32>
    %61 = arith.mulf %59, %60 : vector<1x128xf32>
    %62 = arith.maximumf %43, %49 : vector<1x128xf32>
    %63 = arith.maximumf %62, %55 : vector<1x128xf32>
    %64 = arith.maximumf %63, %61 : vector<1x128xf32>
    %65 = arith.subf %43, %64 : vector<1x128xf32>
    %66 = math.exp %65 : vector<1x128xf32>
    %67 = arith.subf %49, %64 : vector<1x128xf32>
    %68 = math.exp %67 : vector<1x128xf32>
    %69 = arith.subf %55, %64 : vector<1x128xf32>
    %70 = math.exp %69 : vector<1x128xf32>
    %71 = arith.subf %61, %64 : vector<1x128xf32>
    %72 = math.exp %71 : vector<1x128xf32>
    %73 = vector.extract_strided_slice %36 {offsets = [0, 0], sizes = [1, 128], strides = [1, 1]} : vector<4x128xf32> to vector<1x128xf32>
    %74 = arith.mulf %73, %66 : vector<1x128xf32>
    %75 = arith.addf %66, %68 : vector<1x128xf32>
    %76 = vector.extract_strided_slice %36 {offsets = [1, 0], sizes = [1, 128], strides = [1, 1]} : vector<4x128xf32> to vector<1x128xf32>
    %77 = arith.mulf %76, %68 : vector<1x128xf32>
    %78 = arith.addf %74, %77 : vector<1x128xf32>
    %79 = arith.addf %75, %70 : vector<1x128xf32>
    %80 = vector.extract_strided_slice %36 {offsets = [2, 0], sizes = [1, 128], strides = [1, 1]} : vector<4x128xf32> to vector<1x128xf32>
    %81 = arith.mulf %80, %70 : vector<1x128xf32>
    %82 = arith.addf %78, %81 : vector<1x128xf32>
    %83 = arith.addf %79, %72 : vector<1x128xf32>
    %84 = vector.extract_strided_slice %36 {offsets = [3, 0], sizes = [1, 128], strides = [1, 1]} : vector<4x128xf32> to vector<1x128xf32>
    %85 = arith.mulf %84, %72 : vector<1x128xf32>
    %86 = arith.addf %82, %85 : vector<1x128xf32>
    %87 = tpu.reciprocal %83 {approx = true} : vector<1x128xf32> -> vector<1x128xf32>
    %88 = arith.mulf %86, %87 : vector<1x128xf32>
    %cst_38 = arith.constant 0.000000e+00 : f32
    %89 = vector.broadcast %cst_38 : f32 to vector<1x128xf32>
    %90 = arith.maximumf %88, %89 : vector<1x128xf32>
    %91 = vector.extract_strided_slice %34 {offsets = [0, 0], sizes = [1, 128], strides = [1, 1]} : vector<4x128xf32> to vector<1x128xf32>
    %92 = arith.mulf %90, %91 : vector<1x128xf32>
    %93 = arith.addf %35, %92 : vector<1x128xf32>
    %94 = vector.extract_strided_slice %18 {offsets = [32, 0], sizes = [16, 128], strides = [1, 1]} : vector<128x128xf32> to vector<16x128xf32>
    %95 = vector.extract_strided_slice %18 {offsets = [16, 0], sizes = [16, 128], strides = [1, 1]} : vector<128x128xf32> to vector<16x128xf32>
    %96 = arith.mulf %94, %95 : vector<16x128xf32>
    %cst_39 = arith.constant dense<0.000000e+00> : vector<128xf32>
    %97 = vector.multi_reduction <add>, %96, %cst_39 [0] : vector<16x128xf32> to vector<128xf32>
    %98 = vector.shape_cast %97 : vector<128xf32> to vector<1x128xf32>
    %cst_40 = arith.constant 2.500000e-01 : f32
    %99 = vector.broadcast %cst_40 : f32 to vector<1x128xf32>
    %100 = arith.mulf %98, %99 : vector<1x128xf32>
    %101 = vector.extract_strided_slice %18 {offsets = [48, 0], sizes = [16, 128], strides = [1, 1]} : vector<128x128xf32> to vector<16x128xf32>
    %102 = arith.mulf %94, %101 : vector<16x128xf32>
    %cst_41 = arith.constant dense<0.000000e+00> : vector<128xf32>
    %103 = vector.multi_reduction <add>, %102, %cst_41 [0] : vector<16x128xf32> to vector<128xf32>
    %104 = vector.shape_cast %103 : vector<128xf32> to vector<1x128xf32>
    %cst_42 = arith.constant 2.500000e-01 : f32
    %105 = vector.broadcast %cst_42 : f32 to vector<1x128xf32>
    %106 = arith.mulf %104, %105 : vector<1x128xf32>
    %107 = vector.extract_strided_slice %18 {offsets = [80, 0], sizes = [16, 128], strides = [1, 1]} : vector<128x128xf32> to vector<16x128xf32>
    %108 = arith.mulf %94, %107 : vector<16x128xf32>
    %cst_43 = arith.constant dense<0.000000e+00> : vector<128xf32>
    %109 = vector.multi_reduction <add>, %108, %cst_43 [0] : vector<16x128xf32> to vector<128xf32>
    %110 = vector.shape_cast %109 : vector<128xf32> to vector<1x128xf32>
    %cst_44 = arith.constant 2.500000e-01 : f32
    %111 = vector.broadcast %cst_44 : f32 to vector<1x128xf32>
    %112 = arith.mulf %110, %111 : vector<1x128xf32>
    %113 = vector.extract_strided_slice %18 {offsets = [112, 0], sizes = [16, 128], strides = [1, 1]} : vector<128x128xf32> to vector<16x128xf32>
    %114 = arith.mulf %94, %113 : vector<16x128xf32>
    %cst_45 = arith.constant dense<0.000000e+00> : vector<128xf32>
    %115 = vector.multi_reduction <add>, %114, %cst_45 [0] : vector<16x128xf32> to vector<128xf32>
    %116 = vector.shape_cast %115 : vector<128xf32> to vector<1x128xf32>
    %cst_46 = arith.constant 2.500000e-01 : f32
    %117 = vector.broadcast %cst_46 : f32 to vector<1x128xf32>
    %118 = arith.mulf %116, %117 : vector<1x128xf32>
    %119 = arith.maximumf %100, %106 : vector<1x128xf32>
    %120 = arith.maximumf %119, %112 : vector<1x128xf32>
    %121 = arith.maximumf %120, %118 : vector<1x128xf32>
    %122 = arith.subf %100, %121 : vector<1x128xf32>
    %123 = math.exp %122 : vector<1x128xf32>
    %124 = arith.subf %106, %121 : vector<1x128xf32>
    %125 = math.exp %124 : vector<1x128xf32>
    %126 = arith.subf %112, %121 : vector<1x128xf32>
    %127 = math.exp %126 : vector<1x128xf32>
    %128 = arith.subf %118, %121 : vector<1x128xf32>
    %129 = math.exp %128 : vector<1x128xf32>
    %130 = vector.extract_strided_slice %36 {offsets = [0, 0], sizes = [1, 128], strides = [1, 1]} : vector<4x128xf32> to vector<1x128xf32>
    %131 = arith.mulf %130, %123 : vector<1x128xf32>
    %132 = arith.addf %123, %125 : vector<1x128xf32>
    %133 = vector.extract_strided_slice %36 {offsets = [1, 0], sizes = [1, 128], strides = [1, 1]} : vector<4x128xf32> to vector<1x128xf32>
    %134 = arith.mulf %133, %125 : vector<1x128xf32>
    %135 = arith.addf %131, %134 : vector<1x128xf32>
    %136 = arith.addf %132, %127 : vector<1x128xf32>
    %137 = vector.extract_strided_slice %36 {offsets = [2, 0], sizes = [1, 128], strides = [1, 1]} : vector<4x128xf32> to vector<1x128xf32>
    %138 = arith.mulf %137, %127 : vector<1x128xf32>
    %139 = arith.addf %135, %138 : vector<1x128xf32>
    %140 = arith.addf %136, %129 : vector<1x128xf32>
    %141 = vector.extract_strided_slice %36 {offsets = [3, 0], sizes = [1, 128], strides = [1, 1]} : vector<4x128xf32> to vector<1x128xf32>
    %142 = arith.mulf %141, %129 : vector<1x128xf32>
    %143 = arith.addf %139, %142 : vector<1x128xf32>
    %144 = tpu.reciprocal %140 {approx = true} : vector<1x128xf32> -> vector<1x128xf32>
    %145 = arith.mulf %143, %144 : vector<1x128xf32>
    %cst_47 = arith.constant 0.000000e+00 : f32
    %146 = vector.broadcast %cst_47 : f32 to vector<1x128xf32>
    %147 = arith.maximumf %145, %146 : vector<1x128xf32>
    %148 = vector.extract_strided_slice %34 {offsets = [1, 0], sizes = [1, 128], strides = [1, 1]} : vector<4x128xf32> to vector<1x128xf32>
    %149 = arith.mulf %147, %148 : vector<1x128xf32>
    %150 = arith.addf %93, %149 : vector<1x128xf32>
    %151 = vector.extract_strided_slice %18 {offsets = [64, 0], sizes = [16, 128], strides = [1, 1]} : vector<128x128xf32> to vector<16x128xf32>
    %152 = vector.extract_strided_slice %18 {offsets = [16, 0], sizes = [16, 128], strides = [1, 1]} : vector<128x128xf32> to vector<16x128xf32>
    %153 = arith.mulf %151, %152 : vector<16x128xf32>
    %cst_48 = arith.constant dense<0.000000e+00> : vector<128xf32>
    %154 = vector.multi_reduction <add>, %153, %cst_48 [0] : vector<16x128xf32> to vector<128xf32>
    %155 = vector.shape_cast %154 : vector<128xf32> to vector<1x128xf32>
    %cst_49 = arith.constant 2.500000e-01 : f32
    %156 = vector.broadcast %cst_49 : f32 to vector<1x128xf32>
    %157 = arith.mulf %155, %156 : vector<1x128xf32>
    %158 = vector.extract_strided_slice %18 {offsets = [48, 0], sizes = [16, 128], strides = [1, 1]} : vector<128x128xf32> to vector<16x128xf32>
    %159 = arith.mulf %151, %158 : vector<16x128xf32>
    %cst_50 = arith.constant dense<0.000000e+00> : vector<128xf32>
    %160 = vector.multi_reduction <add>, %159, %cst_50 [0] : vector<16x128xf32> to vector<128xf32>
    %161 = vector.shape_cast %160 : vector<128xf32> to vector<1x128xf32>
    %cst_51 = arith.constant 2.500000e-01 : f32
    %162 = vector.broadcast %cst_51 : f32 to vector<1x128xf32>
    %163 = arith.mulf %161, %162 : vector<1x128xf32>
    %164 = vector.extract_strided_slice %18 {offsets = [80, 0], sizes = [16, 128], strides = [1, 1]} : vector<128x128xf32> to vector<16x128xf32>
    %165 = arith.mulf %151, %164 : vector<16x128xf32>
    %cst_52 = arith.constant dense<0.000000e+00> : vector<128xf32>
    %166 = vector.multi_reduction <add>, %165, %cst_52 [0] : vector<16x128xf32> to vector<128xf32>
    %167 = vector.shape_cast %166 : vector<128xf32> to vector<1x128xf32>
    %cst_53 = arith.constant 2.500000e-01 : f32
    %168 = vector.broadcast %cst_53 : f32 to vector<1x128xf32>
    %169 = arith.mulf %167, %168 : vector<1x128xf32>
    %170 = vector.extract_strided_slice %18 {offsets = [112, 0], sizes = [16, 128], strides = [1, 1]} : vector<128x128xf32> to vector<16x128xf32>
    %171 = arith.mulf %151, %170 : vector<16x128xf32>
    %cst_54 = arith.constant dense<0.000000e+00> : vector<128xf32>
    %172 = vector.multi_reduction <add>, %171, %cst_54 [0] : vector<16x128xf32> to vector<128xf32>
    %173 = vector.shape_cast %172 : vector<128xf32> to vector<1x128xf32>
    %cst_55 = arith.constant 2.500000e-01 : f32
    %174 = vector.broadcast %cst_55 : f32 to vector<1x128xf32>
    %175 = arith.mulf %173, %174 : vector<1x128xf32>
    %176 = arith.maximumf %157, %163 : vector<1x128xf32>
    %177 = arith.maximumf %176, %169 : vector<1x128xf32>
    %178 = arith.maximumf %177, %175 : vector<1x128xf32>
    %179 = arith.subf %157, %178 : vector<1x128xf32>
    %180 = math.exp %179 : vector<1x128xf32>
    %181 = arith.subf %163, %178 : vector<1x128xf32>
    %182 = math.exp %181 : vector<1x128xf32>
    %183 = arith.subf %169, %178 : vector<1x128xf32>
    %184 = math.exp %183 : vector<1x128xf32>
    %185 = arith.subf %175, %178 : vector<1x128xf32>
    %186 = math.exp %185 : vector<1x128xf32>
    %187 = vector.extract_strided_slice %36 {offsets = [0, 0], sizes = [1, 128], strides = [1, 1]} : vector<4x128xf32> to vector<1x128xf32>
    %188 = arith.mulf %187, %180 : vector<1x128xf32>
    %189 = arith.addf %180, %182 : vector<1x128xf32>
    %190 = vector.extract_strided_slice %36 {offsets = [1, 0], sizes = [1, 128], strides = [1, 1]} : vector<4x128xf32> to vector<1x128xf32>
    %191 = arith.mulf %190, %182 : vector<1x128xf32>
    %192 = arith.addf %188, %191 : vector<1x128xf32>
    %193 = arith.addf %189, %184 : vector<1x128xf32>
    %194 = vector.extract_strided_slice %36 {offsets = [2, 0], sizes = [1, 128], strides = [1, 1]} : vector<4x128xf32> to vector<1x128xf32>
    %195 = arith.mulf %194, %184 : vector<1x128xf32>
    %196 = arith.addf %192, %195 : vector<1x128xf32>
    %197 = arith.addf %193, %186 : vector<1x128xf32>
    %198 = vector.extract_strided_slice %36 {offsets = [3, 0], sizes = [1, 128], strides = [1, 1]} : vector<4x128xf32> to vector<1x128xf32>
    %199 = arith.mulf %198, %186 : vector<1x128xf32>
    %200 = arith.addf %196, %199 : vector<1x128xf32>
    %201 = tpu.reciprocal %197 {approx = true} : vector<1x128xf32> -> vector<1x128xf32>
    %202 = arith.mulf %200, %201 : vector<1x128xf32>
    %cst_56 = arith.constant 0.000000e+00 : f32
    %203 = vector.broadcast %cst_56 : f32 to vector<1x128xf32>
    %204 = arith.maximumf %202, %203 : vector<1x128xf32>
    %205 = vector.extract_strided_slice %34 {offsets = [2, 0], sizes = [1, 128], strides = [1, 1]} : vector<4x128xf32> to vector<1x128xf32>
    %206 = arith.mulf %204, %205 : vector<1x128xf32>
    %207 = arith.addf %150, %206 : vector<1x128xf32>
    %208 = vector.extract_strided_slice %18 {offsets = [96, 0], sizes = [16, 128], strides = [1, 1]} : vector<128x128xf32> to vector<16x128xf32>
    %209 = vector.extract_strided_slice %18 {offsets = [16, 0], sizes = [16, 128], strides = [1, 1]} : vector<128x128xf32> to vector<16x128xf32>
    %210 = arith.mulf %208, %209 : vector<16x128xf32>
    %cst_57 = arith.constant dense<0.000000e+00> : vector<128xf32>
    %211 = vector.multi_reduction <add>, %210, %cst_57 [0] : vector<16x128xf32> to vector<128xf32>
    %212 = vector.shape_cast %211 : vector<128xf32> to vector<1x128xf32>
    %cst_58 = arith.constant 2.500000e-01 : f32
    %213 = vector.broadcast %cst_58 : f32 to vector<1x128xf32>
    %214 = arith.mulf %212, %213 : vector<1x128xf32>
    %215 = vector.extract_strided_slice %18 {offsets = [48, 0], sizes = [16, 128], strides = [1, 1]} : vector<128x128xf32> to vector<16x128xf32>
    %216 = arith.mulf %208, %215 : vector<16x128xf32>
    %cst_59 = arith.constant dense<0.000000e+00> : vector<128xf32>
    %217 = vector.multi_reduction <add>, %216, %cst_59 [0] : vector<16x128xf32> to vector<128xf32>
    %218 = vector.shape_cast %217 : vector<128xf32> to vector<1x128xf32>
    %cst_60 = arith.constant 2.500000e-01 : f32
    %219 = vector.broadcast %cst_60 : f32 to vector<1x128xf32>
    %220 = arith.mulf %218, %219 : vector<1x128xf32>
    %221 = vector.extract_strided_slice %18 {offsets = [80, 0], sizes = [16, 128], strides = [1, 1]} : vector<128x128xf32> to vector<16x128xf32>
    %222 = arith.mulf %208, %221 : vector<16x128xf32>
    %cst_61 = arith.constant dense<0.000000e+00> : vector<128xf32>
    %223 = vector.multi_reduction <add>, %222, %cst_61 [0] : vector<16x128xf32> to vector<128xf32>
    %224 = vector.shape_cast %223 : vector<128xf32> to vector<1x128xf32>
    %cst_62 = arith.constant 2.500000e-01 : f32
    %225 = vector.broadcast %cst_62 : f32 to vector<1x128xf32>
    %226 = arith.mulf %224, %225 : vector<1x128xf32>
    %227 = vector.extract_strided_slice %18 {offsets = [112, 0], sizes = [16, 128], strides = [1, 1]} : vector<128x128xf32> to vector<16x128xf32>
    %228 = arith.mulf %208, %227 : vector<16x128xf32>
    %cst_63 = arith.constant dense<0.000000e+00> : vector<128xf32>
    %229 = vector.multi_reduction <add>, %228, %cst_63 [0] : vector<16x128xf32> to vector<128xf32>
    %230 = vector.shape_cast %229 : vector<128xf32> to vector<1x128xf32>
    %cst_64 = arith.constant 2.500000e-01 : f32
    %231 = vector.broadcast %cst_64 : f32 to vector<1x128xf32>
    %232 = arith.mulf %230, %231 : vector<1x128xf32>
    %233 = arith.maximumf %214, %220 : vector<1x128xf32>
    %234 = arith.maximumf %233, %226 : vector<1x128xf32>
    %235 = arith.maximumf %234, %232 : vector<1x128xf32>
    %236 = arith.subf %214, %235 : vector<1x128xf32>
    %237 = math.exp %236 : vector<1x128xf32>
    %238 = arith.subf %220, %235 : vector<1x128xf32>
    %239 = math.exp %238 : vector<1x128xf32>
    %240 = arith.subf %226, %235 : vector<1x128xf32>
    %241 = math.exp %240 : vector<1x128xf32>
    %242 = arith.subf %232, %235 : vector<1x128xf32>
    %243 = math.exp %242 : vector<1x128xf32>
    %244 = vector.extract_strided_slice %36 {offsets = [0, 0], sizes = [1, 128], strides = [1, 1]} : vector<4x128xf32> to vector<1x128xf32>
    %245 = arith.mulf %244, %237 : vector<1x128xf32>
    %246 = arith.addf %237, %239 : vector<1x128xf32>
    %247 = vector.extract_strided_slice %36 {offsets = [1, 0], sizes = [1, 128], strides = [1, 1]} : vector<4x128xf32> to vector<1x128xf32>
    %248 = arith.mulf %247, %239 : vector<1x128xf32>
    %249 = arith.addf %245, %248 : vector<1x128xf32>
    %250 = arith.addf %246, %241 : vector<1x128xf32>
    %251 = vector.extract_strided_slice %36 {offsets = [2, 0], sizes = [1, 128], strides = [1, 1]} : vector<4x128xf32> to vector<1x128xf32>
    %252 = arith.mulf %251, %241 : vector<1x128xf32>
    %253 = arith.addf %249, %252 : vector<1x128xf32>
    %254 = arith.addf %250, %243 : vector<1x128xf32>
    %255 = vector.extract_strided_slice %36 {offsets = [3, 0], sizes = [1, 128], strides = [1, 1]} : vector<4x128xf32> to vector<1x128xf32>
    %256 = arith.mulf %255, %243 : vector<1x128xf32>
    %257 = arith.addf %253, %256 : vector<1x128xf32>
    %258 = tpu.reciprocal %254 {approx = true} : vector<1x128xf32> -> vector<1x128xf32>
    %259 = arith.mulf %257, %258 : vector<1x128xf32>
    %cst_65 = arith.constant 0.000000e+00 : f32
    %260 = vector.broadcast %cst_65 : f32 to vector<1x128xf32>
    %261 = arith.maximumf %259, %260 : vector<1x128xf32>
    %262 = vector.extract_strided_slice %34 {offsets = [3, 0], sizes = [1, 128], strides = [1, 1]} : vector<4x128xf32> to vector<1x128xf32>
    %263 = arith.mulf %261, %262 : vector<1x128xf32>
    %264 = arith.addf %207, %263 : vector<1x128xf32>
    %c0_66 = arith.constant 0 : index
    %c0_67 = arith.constant 0 : index
    %265 = vector.load %arg13[%c0_66, %c0_67] : memref<1x128xf32, #tpu.memory_space<vmem>>, vector<1x128xf32>
    tpu.vector_store %arg13[%c0_66, %c0_67], %264 {strides = array<i32>} : memref<1x128xf32, #tpu.memory_space<vmem>>, vector<1x128xf32>,
    return
  }
  func.func @transform_0(%arg0: i32) -> (i32, i32) {
    %c0_i32 = arith.constant 0 : i32
    %c0_i32_0 = arith.constant 0 : i32
    return %c0_i32, %arg0 : i32, i32
  }
  func.func @transform_1(%arg0: i32) -> (i32, i32) {
    %c0_i32 = arith.constant 0 : i32
    %c0_i32_0 = arith.constant 0 : i32
    return %c0_i32, %arg0 : i32, i32
  }
  func.func @transform_2(%arg0: i32) -> (i32, i32) {
    %c0_i32 = arith.constant 0 : i32
    %c0_i32_0 = arith.constant 0 : i32
    return %c0_i32, %arg0 : i32, i32
  }
  func.func @transform_3(%arg0: i32) -> (i32, i32) {
    %c0_i32 = arith.constant 0 : i32
    %c0_i32_0 = arith.constant 0 : i32
    %c0_i32_1 = arith.constant 0 : i32
    return %c0_i32, %c0_i32_0 : i32, i32
  }
  func.func @transform_4(%arg0: i32) -> (i32, i32) {
    %c0_i32 = arith.constant 0 : i32
    %c0_i32_0 = arith.constant 0 : i32
    %c0_i32_1 = arith.constant 0 : i32
    return %c0_i32, %c0_i32_0 : i32, i32
  }
  func.func @transform_5(%arg0: i32) -> (i32, i32) {
    %c0_i32 = arith.constant 0 : i32
    %c0_i32_0 = arith.constant 0 : i32
    %c0_i32_1 = arith.constant 0 : i32
    return %c0_i32, %c0_i32_0 : i32, i32
  }
  func.func @transform_6(%arg0: i32) -> (i32, i32) {
    %c0_i32 = arith.constant 0 : i32
    %c0_i32_0 = arith.constant 0 : i32
    %c0_i32_1 = arith.constant 0 : i32
    return %c0_i32, %c0_i32_0 : i32, i32
  }
  func.func @transform_7(%arg0: i32) -> (i32, i32) {
    %c0_i32 = arith.constant 0 : i32
    %c0_i32_0 = arith.constant 0 : i32
    %c0_i32_1 = arith.constant 0 : i32
    return %c0_i32, %c0_i32_0 : i32, i32
  }
  func.func @transform_8(%arg0: i32) -> (i32, i32) {
    %c0_i32 = arith.constant 0 : i32
    %c0_i32_0 = arith.constant 0 : i32
    %c0_i32_1 = arith.constant 0 : i32
    return %c0_i32, %c0_i32_0 : i32, i32
  }
  func.func @transform_9(%arg0: i32) -> (i32, i32) {
    %c0_i32 = arith.constant 0 : i32
    %c0_i32_0 = arith.constant 0 : i32
    %c0_i32_1 = arith.constant 0 : i32
    return %c0_i32, %c0_i32_0 : i32, i32
  }
  func.func @transform_10(%arg0: i32) -> (i32, i32) {
    %c0_i32 = arith.constant 0 : i32
    %c0_i32_0 = arith.constant 0 : i32
    %c0_i32_1 = arith.constant 0 : i32
    return %c0_i32, %c0_i32_0 : i32, i32
  }
  func.func @transform_11(%arg0: i32) -> (i32, i32) {
    %c0_i32 = arith.constant 0 : i32
    %c0_i32_0 = arith.constant 0 : i32
    %c0_i32_1 = arith.constant 0 : i32
    return %c0_i32, %c0_i32_0 : i32, i32
  }
  func.func @transform_12(%arg0: i32) -> (i32, i32) {
    %c0_i32 = arith.constant 0 : i32
    %c0_i32_0 = arith.constant 0 : i32
    return %c0_i32, %arg0 : i32, i32
  }
}

</mosaic_0001>

<llo_original>
// kernel: squeeze.1
$region0: #{squeeze.1}
  %s0 = inlined_call_operand.vmem [shape: f32[16], index: 0, kind: input, shape index: {}]
  %s1 = inlined_call_operand.hbm [shape: f32[2,8,1], index: 1, kind: output, shape index: {}]
  $region1: #{squeeze.1} parent=0
    #allocation0 [shape = 'u8[1024]{0}', space=vmem, size = 0x400, scoped, tag = 'operand span for operand 1']
    #allocation1 [shape = 's32[1]{0}', space=sflag, size = 0x4, scoped, tag = 'scoped memory for squeeze.1']
    #allocation2 [shape = 'u8[4096]{0}', space=vmem, size = 0x1000, scoped, tag = 'scoped mem for output reshape']
    #allocation3 [shape = 'u8[4096]{0}', space=vmem, size = 0x1000, scoped, tag = 'scoped mem for input reshape']
    %2 = vsyncpa [#allocation1], 0
    %s4 = sshllo.u32 0, 1
    %v5 = vld [vmem:[%s0] sm:%s4]
    %6 = vst [vmem:[#allocation3] sm:%s4] %v5
    %v7 = vld [vmem:[#allocation3] sm:$0x1]
    %vm8 = vcmask 64512
    %9 = vst.msk [vmem:[#allocation2] sm:$0x1] %vm8, %v7
    %v10 = vld [vmem:[#allocation3] sm:$0x1]
    %11 = vrot.lane.b32.xlu0 %v10, 120
    %v12 = vpop.permute.xlu0 %11
    %vm13 = vcmask 64512
    %s14 = scalar_lea.vmem [#allocation2], 1
    %15 = vst.msk [vmem:[%s14] sm:$0x1] %vm13, %v12
    %s17 = sshllo.u32 0, 2
    %v19 = vld [vmem:[#allocation2] sm:%s17]
    %s20 = sshllo.u32 0, 2
    %21 = vst [vmem:[#allocation0] sm:%s20] %v19
    %s23 = ssub.s32 32, 32
    %24 = vsyncadd [#allocation1], %s23
    %s26 = sshll.u32 [#allocation0], 4
    %s27 = int_to_ptr.vmem [resolvable:$true] %s26
    %29 = dma.vmem_to_hbm [thread:$0]  %s27, 32, %s1, [#allocation1]
    %30 = dma.done [#allocation1], 32
    %31 = vsyncpa [#allocation1], 1

// kernel: ng2a_mixer_forward.1
$region0: #{ng2a_mixer_forward.1}
  #allocation0 [shape = 'u32[]', space=smem, size = 0x4, offset = 0x4, fixed_abs, tag = 'smem constant byte address 0x4 - core index']
  #allocation1 [shape = 'u32[144,128]{1,0:T(1,128)}', space=vmem, size = 0x12000, scoped, tag = 'internal scratch']
  %s0 = inlined_call_operand.vmem [shape: bf16[64,128], index: 0, kind: input, shape index: {}]
  %s1 = inlined_call_operand.vmem [shape: f32[4,128], index: 1, kind: input, shape index: {}]
  %s2 = inlined_call_operand.vmem [shape: bf16[64,128], index: 2, kind: input, shape index: {}]
  %s3 = inlined_call_operand.vmem [shape: bf16[256,64], index: 3, kind: input, shape index: {}]
  %s4 = inlined_call_operand.vmem [shape: f32[256,1], index: 4, kind: input, shape index: {}]
  %s5 = inlined_call_operand.vmem [shape: bf16[128,256], index: 5, kind: input, shape index: {}]
  %s6 = inlined_call_operand.vmem [shape: f32[128,1], index: 6, kind: input, shape index: {}]
  %s7 = inlined_call_operand.vmem [shape: bf16[128,128], index: 7, kind: input, shape index: {}]
  %s8 = inlined_call_operand.vmem [shape: bf16[64,64], index: 8, kind: input, shape index: {}]
  %s9 = inlined_call_operand.vmem [shape: f32[64,1], index: 9, kind: input, shape index: {}]
  %s10 = inlined_call_operand.vmem [shape: bf16[8,64], index: 10, kind: input, shape index: {}]
  %s11 = inlined_call_operand.vmem [shape: f32[8,1], index: 11, kind: input, shape index: {}]
  %s12 = inlined_call_operand.vmem [shape: f32[1,128], index: 12, kind: output, shape index: {}]
  %s13 = sld [smem:[#allocation0]]
  $region58: #{ng2a_mixer_forward.1} parent=0
    _
  %s15 = ssub.s32 1, %s13
  %s16 = scalar_select 0, %s15, %s13
  // Predicated region
  $region2: #{ng2a_mixer_forward.1} parent=0 // pred_check
    _
  $region3: #{ng2a_mixer_forward.1} parent=0 // pred_check_branch
    %18 = sbr.rel (0) target = $region5
  $region4: #{ng2a_mixer_forward.1} parent=0 // pred_region
    _
  $region5: #{ng2a_mixer_forward.1} parent=0 // pred_fallthru
    _
  // Predicated region
  $region6: #{ng2a_mixer_forward.1} parent=0 // pred_check
    _
  $region7: #{ng2a_mixer_forward.1} parent=0 // pred_check_branch
    %20 = sbr.rel (0) target = $region9
  $region8: #{ng2a_mixer_forward.1} parent=0 // pred_region
    _
  $region9: #{ng2a_mixer_forward.1} parent=0 // pred_fallthru
    _
  // Predicated region
  $region10: #{ng2a_mixer_forward.1} parent=0 // pred_check
    _
  $region11: #{ng2a_mixer_forward.1} parent=0 // pred_check_branch
    %22 = sbr.rel (0) target = $region13
  $region12: #{ng2a_mixer_forward.1} parent=0 // pred_region
    _
  $region13: #{ng2a_mixer_forward.1} parent=0 // pred_fallthru
    _
  // Predicated region
  $region14: #{ng2a_mixer_forward.1} parent=0 // pred_check
    _
  $region15: #{ng2a_mixer_forward.1} parent=0 // pred_check_branch
    %24 = sbr.rel (0) target = $region17
  $region16: #{ng2a_mixer_forward.1} parent=0 // pred_region
    _
  $region17: #{ng2a_mixer_forward.1} parent=0 // pred_fallthru
    _
  // Predicated region
  $region18: #{ng2a_mixer_forward.1} parent=0 // pred_check
    _
  $region19: #{ng2a_mixer_forward.1} parent=0 // pred_check_branch
    %26 = sbr.rel (0) target = $region21
  $region20: #{ng2a_mixer_forward.1} parent=0 // pred_region
    _
  $region21: #{ng2a_mixer_forward.1} parent=0 // pred_fallthru
    _
  // Predicated region
  $region22: #{ng2a_mixer_forward.1} parent=0 // pred_check
    _
  $region23: #{ng2a_mixer_forward.1} parent=0 // pred_check_branch
    %28 = sbr.rel (0) target = $region25
  $region24: #{ng2a_mixer_forward.1} parent=0 // pred_region
    _
  $region25: #{ng2a_mixer_forward.1} parent=0 // pred_fallthru
    _
  // Predicated region
  $region26: #{ng2a_mixer_forward.1} parent=0 // pred_check
    _
  $region27: #{ng2a_mixer_forward.1} parent=0 // pred_check_branch
    %30 = sbr.rel (0) target = $region29
  $region28: #{ng2a_mixer_forward.1} parent=0 // pred_region
    _
  $region29: #{ng2a_mixer_forward.1} parent=0 // pred_fallthru
    _
  // Predicated region
  $region30: #{ng2a_mixer_forward.1} parent=0 // pred_check
    _
  $region31: #{ng2a_mixer_forward.1} parent=0 // pred_check_branch
    %32 = sbr.rel (0) target = $region33
  $region32: #{ng2a_mixer_forward.1} parent=0 // pred_region
    _
  $region33: #{ng2a_mixer_forward.1} parent=0 // pred_fallthru
    _
  // Predicated region
  $region34: #{ng2a_mixer_forward.1} parent=0 // pred_check
    _
  $region35: #{ng2a_mixer_forward.1} parent=0 // pred_check_branch
    %34 = sbr.rel (0) target = $region37
  $region36: #{ng2a_mixer_forward.1} parent=0 // pred_region
    _
  $region37: #{ng2a_mixer_forward.1} parent=0 // pred_fallthru
    _
  // Predicated region
  $region38: #{ng2a_mixer_forward.1} parent=0 // pred_check
    _
  $region39: #{ng2a_mixer_forward.1} parent=0 // pred_check_branch
    %36 = sbr.rel (0) target = $region41
  $region40: #{ng2a_mixer_forward.1} parent=0 // pred_region
    _
  $region41: #{ng2a_mixer_forward.1} parent=0 // pred_fallthru
    _
  // Predicated region
  $region42: #{ng2a_mixer_forward.1} parent=0 // pred_check
    _
  $region43: #{ng2a_mixer_forward.1} parent=0 // pred_check_branch
    %38 = sbr.rel (0) target = $region45
  $region44: #{ng2a_mixer_forward.1} parent=0 // pred_region
    _
  $region45: #{ng2a_mixer_forward.1} parent=0 // pred_fallthru
    _
  // Predicated region
  $region46: #{ng2a_mixer_forward.1} parent=0 // pred_check
    _
  $region47: #{ng2a_mixer_forward.1} parent=0 // pred_check_branch
    %40 = sbr.rel (0) target = $region49
  $region48: #{ng2a_mixer_forward.1} parent=0 // pred_region
    _
  $region49: #{ng2a_mixer_forward.1} parent=0 // pred_fallthru
    _
  %v42 = vld [vmem:[%s0] sm:$0xf]
  %v43 = vld [vmem:[%s0 + $0x4] sm:$0xf]
  %v44 = vld [vmem:[%s0 + $0x8] sm:$0xf]
  %v45 = vld [vmem:[%s0 + $0xc] sm:$0xf]
  %v46 = vld [vmem:[%s0 + $0x10] sm:$0xf]
  %v47 = vld [vmem:[%s0 + $0x14] sm:$0xf]
  %v48 = vld [vmem:[%s0 + $0x18] sm:$0xf]
  %v49 = vld [vmem:[%s0 + $0x1c] sm:$0xf]
  %v50 = vld [vmem:[%s3] sm:$0xf]
  %v51 = vld [vmem:[%s3 + $0x4] sm:$0xf]
  %v52 = vld [vmem:[%s3 + $0x8] sm:$0xf]
  %v53 = vld [vmem:[%s3 + $0xc] sm:$0xf]
  %v54 = vld [vmem:[%s3 + $0x10] sm:$0xf]
  %v55 = vld [vmem:[%s3 + $0x14] sm:$0xf]
  %v56 = vld [vmem:[%s3 + $0x18] sm:$0xf]
  %v57 = vld [vmem:[%s3 + $0x1c] sm:$0xf]
  %v58 = vld [vmem:[%s3 + $0x20] sm:$0xf]
  %v59 = vld [vmem:[%s3 + $0x24] sm:$0xf]
  %v60 = vld [vmem:[%s3 + $0x28] sm:$0xf]
  %v61 = vld [vmem:[%s3 + $0x2c] sm:$0xf]
  %v62 = vld [vmem:[%s3 + $0x30] sm:$0xf]
  %v63 = vld [vmem:[%s3 + $0x34] sm:$0xf]
  %v64 = vld [vmem:[%s3 + $0x38] sm:$0xf]
  %v65 = vld [vmem:[%s3 + $0x3c] sm:$0xf]
  %v66 = vld [vmem:[%s3 + $0x40] sm:$0xf]
  %v67 = vld [vmem:[%s3 + $0x44] sm:$0xf]
  %v68 = vld [vmem:[%s3 + $0x48] sm:$0xf]
  %v69 = vld [vmem:[%s3 + $0x4c] sm:$0xf]
  %v70 = vld [vmem:[%s3 + $0x50] sm:$0xf]
  %v71 = vld [vmem:[%s3 + $0x54] sm:$0xf]
  %v72 = vld [vmem:[%s3 + $0x58] sm:$0xf]
  %v73 = vld [vmem:[%s3 + $0x5c] sm:$0xf]
  %v74 = vld [vmem:[%s3 + $0x60] sm:$0xf]
  %v75 = vld [vmem:[%s3 + $0x64] sm:$0xf]
  %v76 = vld [vmem:[%s3 + $0x68] sm:$0xf]
  %v77 = vld [vmem:[%s3 + $0x6c] sm:$0xf]
  %v78 = vld [vmem:[%s3 + $0x70] sm:$0xf]
  %v79 = vld [vmem:[%s3 + $0x74] sm:$0xf]
  %v80 = vld [vmem:[%s3 + $0x78] sm:$0xf]
  %v81 = vld [vmem:[%s3 + $0x7c] sm:$0xf]
  %v82 = vld [vmem:[%s4] sm:$0xff]
  %v83 = vld [vmem:[%s4 + $0x8] sm:$0xff]
  %v84 = vld [vmem:[%s4 + $0x10] sm:$0xff]
  %v85 = vld [vmem:[%s4 + $0x18] sm:$0xff]
  %v86 = vld [vmem:[%s4 + $0x20] sm:$0xff]
  %v87 = vld [vmem:[%s4 + $0x28] sm:$0xff]
  %v88 = vld [vmem:[%s4 + $0x30] sm:$0xff]
  %v89 = vld [vmem:[%s4 + $0x38] sm:$0xff]
  %v90 = vld [vmem:[%s4 + $0x40] sm:$0xff]
  %v91 = vld [vmem:[%s4 + $0x48] sm:$0xff]
  %v92 = vld [vmem:[%s4 + $0x50] sm:$0xff]
  %v93 = vld [vmem:[%s4 + $0x58] sm:$0xff]
  %v94 = vld [vmem:[%s4 + $0x60] sm:$0xff]
  %v95 = vld [vmem:[%s4 + $0x68] sm:$0xff]
  %v96 = vld [vmem:[%s4 + $0x70] sm:$0xff]
  %v97 = vld [vmem:[%s4 + $0x78] sm:$0xff]
  %v98 = vld [vmem:[%s4 + $0x80] sm:$0xff]
  %v99 = vld [vmem:[%s4 + $0x88] sm:$0xff]
  %v100 = vld [vmem:[%s4 + $0x90] sm:$0xff]
  %v101 = vld [vmem:[%s4 + $0x98] sm:$0xff]
  %v102 = vld [vmem:[%s4 + $0xa0] sm:$0xff]
  %v103 = vld [vmem:[%s4 + $0xa8] sm:$0xff]
  %v104 = vld [vmem:[%s4 + $0xb0] sm:$0xff]
  %v105 = vld [vmem:[%s4 + $0xb8] sm:$0xff]
  %v106 = vld [vmem:[%s4 + $0xc0] sm:$0xff]
  %v107 = vld [vmem:[%s4 + $0xc8] sm:$0xff]
  %v108 = vld [vmem:[%s4 + $0xd0] sm:$0xff]
  %v109 = vld [vmem:[%s4 + $0xd8] sm:$0xff]
  %v110 = vld [vmem:[%s4 + $0xe0] sm:$0xff]
  %v111 = vld [vmem:[%s4 + $0xe8] sm:$0xff]
  %v112 = vld [vmem:[%s4 + $0xf0] sm:$0xff]
  %v113 = vld [vmem:[%s4 + $0xf8] sm:$0xff]
  %115 = vset.pattern.permute.xlu0 0
  %116 = vperm.xlu0 %115, %v82
  %v117 = vpop.permute.xlu0 %116
  %120 = vset.pattern.permute.xlu0 0
  %121 = vperm.xlu0 %120, %v83
  %v122 = vpop.permute.xlu0 %121
  %125 = vset.pattern.permute.xlu0 0
  %126 = vperm.xlu0 %125, %v84
  %v127 = vpop.permute.xlu0 %126
  %130 = vset.pattern.permute.xlu0 0
  %131 = vperm.xlu0 %130, %v85
  %v132 = vpop.permute.xlu0 %131
  %135 = vset.pattern.permute.xlu0 0
  %136 = vperm.xlu0 %135, %v86
  %v137 = vpop.permute.xlu0 %136
  %140 = vset.pattern.permute.xlu0 0
  %141 = vperm.xlu0 %140, %v87
  %v142 = vpop.permute.xlu0 %141
  %145 = vset.pattern.permute.xlu0 0
  %146 = vperm.xlu0 %145, %v88
  %v147 = vpop.permute.xlu0 %146
  %150 = vset.pattern.permute.xlu0 0
  %151 = vperm.xlu0 %150, %v89
  %v152 = vpop.permute.xlu0 %151
  %155 = vset.pattern.permute.xlu0 0
  %156 = vperm.xlu0 %155, %v90
  %v157 = vpop.permute.xlu0 %156
  %160 = vset.pattern.permute.xlu0 0
  %161 = vperm.xlu0 %160, %v91
  %v162 = vpop.permute.xlu0 %161
  %165 = vset.pattern.permute.xlu0 0
  %166 = vperm.xlu0 %165, %v92
  %v167 = vpop.permute.xlu0 %166
  %170 = vset.pattern.permute.xlu0 0
  %171 = vperm.xlu0 %170, %v93
  %v172 = vpop.permute.xlu0 %171
  %175 = vset.pattern.permute.xlu0 0
  %176 = vperm.xlu0 %175, %v94
  %v177 = vpop.permute.xlu0 %176
  %180 = vset.pattern.permute.xlu0 0
  %181 = vperm.xlu0 %180, %v95
  %v182 = vpop.permute.xlu0 %181
  %185 = vset.pattern.permute.xlu0 0
  %186 = vperm.xlu0 %185, %v96
  %v187 = vpop.permute.xlu0 %186
  %190 = vset.pattern.permute.xlu0 0
  %191 = vperm.xlu0 %190, %v97
  %v192 = vpop.permute.xlu0 %191
  %195 = vset.pattern.permute.xlu0 0
  %196 = vperm.xlu0 %195, %v98
  %v197 = vpop.permute.xlu0 %196
  %200 = vset.pattern.permute.xlu0 0
  %201 = vperm.xlu0 %200, %v99
  %v202 = vpop.permute.xlu0 %201
  %205 = vset.pattern.permute.xlu0 0
  %206 = vperm.xlu0 %205, %v100
  %v207 = vpop.permute.xlu0 %206
  %210 = vset.pattern.permute.xlu0 0
  %211 = vperm.xlu0 %210, %v101
  %v212 = vpop.permute.xlu0 %211
  %215 = vset.pattern.permute.xlu0 0
  %216 = vperm.xlu0 %215, %v102
  %v217 = vpop.permute.xlu0 %216
  %220 = vset.pattern.permute.xlu0 0
  %221 = vperm.xlu0 %220, %v103
  %v222 = vpop.permute.xlu0 %221
  %225 = vset.pattern.permute.xlu0 0
  %226 = vperm.xlu0 %225, %v104
  %v227 = vpop.permute.xlu0 %226
  %230 = vset.pattern.permute.xlu0 0
  %231 = vperm.xlu0 %230, %v105
  %v232 = vpop.permute.xlu0 %231
  %235 = vset.pattern.permute.xlu0 0
  %236 = vperm.xlu0 %235, %v106
  %v237 = vpop.permute.xlu0 %236
  %240 = vset.pattern.permute.xlu0 0
  %241 = vperm.xlu0 %240, %v107
  %v242 = vpop.permute.xlu0 %241
  %245 = vset.pattern.permute.xlu0 0
  %246 = vperm.xlu0 %245, %v108
  %v247 = vpop.permute.xlu0 %246
  %250 = vset.pattern.permute.xlu0 0
  %251 = vperm.xlu0 %250, %v109
  %v252 = vpop.permute.xlu0 %251
  %255 = vset.pattern.permute.xlu0 0
  %256 = vperm.xlu0 %255, %v110
  %v257 = vpop.permute.xlu0 %256
  %260 = vset.pattern.permute.xlu0 0
  %261 = vperm.xlu0 %260, %v111
  %v262 = vpop.permute.xlu0 %261
  %265 = vset.pattern.permute.xlu0 0
  %266 = vperm.xlu0 %265, %v112
  %v267 = vpop.permute.xlu0 %266
  %270 = vset.pattern.permute.xlu0 0
  %271 = vperm.xlu0 %270, %v113
  %v272 = vpop.permute.xlu0 %271
  %v306 = vunpack.c.l.b16 %v50
  %v307 = vunpack.c.l.b16 %v51
  %v308 = vunpack.c.l.b16 %v52
  %v309 = vunpack.c.l.b16 %v53
  %v310 = vunpack.c.l.b16 %v54
  %v311 = vunpack.c.l.b16 %v55
  %v312 = vunpack.c.l.b16 %v56
  %v313 = vunpack.c.l.b16 %v57
  %v314 = vunpack.c.l.b16 %v58
  %v315 = vunpack.c.l.b16 %v59
  %v316 = vunpack.c.l.b16 %v60
  %v317 = vunpack.c.l.b16 %v61
  %v318 = vunpack.c.l.b16 %v62
  %v319 = vunpack.c.l.b16 %v63
  %v320 = vunpack.c.l.b16 %v64
  %v321 = vunpack.c.l.b16 %v65
  %v322 = vunpack.c.l.b16 %v66
  %v323 = vunpack.c.l.b16 %v67
  %v324 = vunpack.c.l.b16 %v68
  %v325 = vunpack.c.l.b16 %v69
  %v326 = vunpack.c.l.b16 %v70
  %v327 = vunpack.c.l.b16 %v71
  %v328 = vunpack.c.l.b16 %v72
  %v329 = vunpack.c.l.b16 %v73
  %v330 = vunpack.c.l.b16 %v74
  %v331 = vunpack.c.l.b16 %v75
  %v332 = vunpack.c.l.b16 %v76
  %v333 = vunpack.c.l.b16 %v77
  %v334 = vunpack.c.l.b16 %v78
  %v335 = vunpack.c.l.b16 %v79
  %v336 = vunpack.c.l.b16 %v80
  %v337 = vunpack.c.l.b16 %v81
  %v338 = vpack.c.b16 %v307, %v306
  %v339 = vpack.c.b16 %v309, %v308
  %v340 = vpack.c.b16 %v311, %v310
  %v341 = vpack.c.b16 %v313, %v312
  %v342 = vpack.c.b16 %v315, %v314
  %v343 = vpack.c.b16 %v317, %v316
  %v344 = vpack.c.b16 %v319, %v318
  %v345 = vpack.c.b16 %v321, %v320
  %v346 = vpack.c.b16 %v323, %v322
  %v347 = vpack.c.b16 %v325, %v324
  %v348 = vpack.c.b16 %v327, %v326
  %v349 = vpack.c.b16 %v329, %v328
  %v350 = vpack.c.b16 %v331, %v330
  %v351 = vpack.c.b16 %v333, %v332
  %v352 = vpack.c.b16 %v335, %v334
  %v353 = vpack.c.b16 %v337, %v336
  %v362 = vunpack.c.l.b16 %v42
  %v363 = vunpack.c.l.b16 %v43
  %v364 = vunpack.c.l.b16 %v44
  %v365 = vunpack.c.l.b16 %v45
  %v366 = vunpack.c.l.b16 %v46
  %v367 = vunpack.c.l.b16 %v47
  %v368 = vunpack.c.l.b16 %v48
  %v369 = vunpack.c.l.b16 %v49
  %v370 = vpack.c.b16 %v363, %v362
  %v371 = vpack.c.b16 %v365, %v364
  %v372 = vpack.c.b16 %v367, %v366
  %v373 = vpack.c.b16 %v369, %v368
  %vm378 = vcmask 523264
  %v380 = vsel %vm378, %v338, 0
  %v383 = vsel %vm378, %v339, 0
  %v386 = vsel %vm378, %v340, 0
  %v389 = vsel %vm378, %v341, 0
  %v392 = vsel %vm378, %v342, 0
  %v395 = vsel %vm378, %v343, 0
  %v398 = vsel %vm378, %v344, 0
  %v401 = vsel %vm378, %v345, 0
  %v404 = vsel %vm378, %v346, 0
  %v407 = vsel %vm378, %v347, 0
  %v410 = vsel %vm378, %v348, 0
  %v413 = vsel %vm378, %v349, 0
  %v416 = vsel %vm378, %v350, 0
  %v419 = vsel %vm378, %v351, 0
  %v422 = vsel %vm378, %v352, 0
  %v425 = vsel %vm378, %v353, 0
  %427 = vmatprep.subr.bf16.mxu0 0
  %428 = vmatpush1.bf16.msra.mxu0 %v370
  %429 = vmatprep.subr.bf16.mxu0 0
  %430 = vmatpush1.bf16.msra.mxu0 %v371
  %431 = vmatprep.subr.bf16.mxu0 0
  %432 = vmatpush1.bf16.msra.mxu0 %v372
  %433 = vmatprep.subr.bf16.mxu0 0
  %434 = vmatpush1.bf16.msra.mxu0 %v373
  %435 = vmatprep.subr.bf16.mxu0 0
  %436 = vmatpush1.bf16.msra.mxu0 0
  %437 = vmatprep.subr.bf16.mxu0 0
  %438 = vmatpush1.bf16.msra.mxu0 0
  %439 = vmatprep.subr.bf16.mxu0 0
  %440 = vmatpush1.bf16.msra.mxu0 0
  %441 = vmatprep.subr.bf16.mxu0 0
  %442 = vmatpush1.bf16.msra.mxu0 0
  %443 = vmatprep.subr.bf16.mxu0 0
  %444 = vmatpush1.bf16.msra.mxu0 0
  %445 = vmatprep.subr.bf16.mxu0 0
  %446 = vmatpush1.bf16.msra.mxu0 0
  %447 = vmatprep.subr.bf16.mxu0 0
  %448 = vmatpush1.bf16.msra.mxu0 0
  %449 = vmatprep.subr.bf16.mxu0 0
  %450 = vmatpush1.bf16.msra.mxu0 0
  %451 = vmatprep.subr.bf16.mxu0 0
  %452 = vmatpush1.bf16.msra.mxu0 0
  %453 = vmatprep.subr.bf16.mxu0 0
  %454 = vmatpush1.bf16.msra.mxu0 0
  %455 = vmatprep.subr.bf16.mxu0 0
  %456 = vmatpush1.bf16.msra.mxu0 0
  %457 = vmatprep.subr.bf16.mxu0 0
  %458 = vmatpush1.bf16.msra.mxu0 0
  %459 = vmatprep.mubr.bf16.mxu0 0
  %460 = vmatmul.mubr.bf16.gmra.mrb[0].mxu0 %v380
  %v461 = vpop.f32.mrb[0].mxu0
  %v462 = vadd.f32 %v117, %v461
  %v463 = vpop.f32.mrb[0].mxu0
  %v464 = vpop.f32.mrb[0].mxu0
  %v465 = vadd.f32 %v122, %v464
  %v466 = vpop.f32.mrb[0].mxu0
  %467 = vmatprep.mubr.bf16.mxu0 0
  %468 = vmatmul.mubr.bf16.gmra.mrb[0].mxu0 %v383
  %v469 = vpop.f32.mrb[0].mxu0
  %v470 = vadd.f32 %v127, %v469
  %v471 = vpop.f32.mrb[0].mxu0
  %v472 = vpop.f32.mrb[0].mxu0
  %v473 = vadd.f32 %v132, %v472
  %v474 = vpop.f32.mrb[0].mxu0
  %475 = vmatprep.mubr.bf16.mxu0 0
  %476 = vmatmul.mubr.bf16.gmra.mrb[0].mxu0 %v386
  %v477 = vpop.f32.mrb[0].mxu0
  %v478 = vadd.f32 %v137, %v477
  %v479 = vpop.f32.mrb[0].mxu0
  %v480 = vpop.f32.mrb[0].mxu0
  %v481 = vadd.f32 %v142, %v480
  %v482 = vpop.f32.mrb[0].mxu0
  %483 = vmatprep.mubr.bf16.mxu0 0
  %484 = vmatmul.mubr.bf16.gmra.mrb[0].mxu0 %v389
  %v485 = vpop.f32.mrb[0].mxu0
  %v486 = vadd.f32 %v147, %v485
  %v487 = vpop.f32.mrb[0].mxu0
  %v488 = vpop.f32.mrb[0].mxu0
  %v489 = vadd.f32 %v152, %v488
  %v490 = vpop.f32.mrb[0].mxu0
  %491 = vmatprep.mubr.bf16.mxu0 0
  %492 = vmatmul.mubr.bf16.gmra.mrb[0].mxu0 %v392
  %v493 = vpop.f32.mrb[0].mxu0
  %v494 = vadd.f32 %v157, %v493
  %v495 = vpop.f32.mrb[0].mxu0
  %v496 = vpop.f32.mrb[0].mxu0
  %v497 = vadd.f32 %v162, %v496
  %v498 = vpop.f32.mrb[0].mxu0
  %499 = vmatprep.mubr.bf16.mxu0 0
  %500 = vmatmul.mubr.bf16.gmra.mrb[0].mxu0 %v395
  %v501 = vpop.f32.mrb[0].mxu0
  %v502 = vadd.f32 %v167, %v501
  %v503 = vpop.f32.mrb[0].mxu0
  %v504 = vpop.f32.mrb[0].mxu0
  %v505 = vadd.f32 %v172, %v504
  %v506 = vpop.f32.mrb[0].mxu0
  %507 = vmatprep.mubr.bf16.mxu0 0
  %508 = vmatmul.mubr.bf16.gmra.mrb[0].mxu0 %v398
  %v509 = vpop.f32.mrb[0].mxu0
  %v510 = vadd.f32 %v177, %v509
  %v511 = vpop.f32.mrb[0].mxu0
  %v512 = vpop.f32.mrb[0].mxu0
  %v513 = vadd.f32 %v182, %v512
  %v514 = vpop.f32.mrb[0].mxu0
  %515 = vmatprep.mubr.bf16.mxu0 0
  %516 = vmatmul.mubr.bf16.gmra.mrb[0].mxu0 %v401
  %v517 = vpop.f32.mrb[0].mxu0
  %v518 = vadd.f32 %v187, %v517
  %v519 = vpop.f32.mrb[0].mxu0
  %v520 = vpop.f32.mrb[0].mxu0
  %v521 = vadd.f32 %v192, %v520
  %v522 = vpop.f32.mrb[0].mxu0
  %523 = vmatprep.mubr.bf16.mxu0 0
  %524 = vmatmul.mubr.bf16.gmra.mrb[0].mxu0 %v404
  %v525 = vpop.f32.mrb[0].mxu0
  %v526 = vadd.f32 %v197, %v525
  %v527 = vpop.f32.mrb[0].mxu0
  %v528 = vpop.f32.mrb[0].mxu0
  %v529 = vadd.f32 %v202, %v528
  %v530 = vpop.f32.mrb[0].mxu0
  %531 = vmatprep.mubr.bf16.mxu0 0
  %532 = vmatmul.mubr.bf16.gmra.mrb[0].mxu0 %v407
  %v533 = vpop.f32.mrb[0].mxu0
  %v534 = vadd.f32 %v207, %v533
  %v535 = vpop.f32.mrb[0].mxu0
  %v536 = vpop.f32.mrb[0].mxu0
  %v537 = vadd.f32 %v212, %v536
  %v538 = vpop.f32.mrb[0].mxu0
  %539 = vmatprep.mubr.bf16.mxu0 0
  %540 = vmatmul.mubr.bf16.gmra.mrb[0].mxu0 %v410
  %v541 = vpop.f32.mrb[0].mxu0
  %v542 = vadd.f32 %v217, %v541
  %v543 = vpop.f32.mrb[0].mxu0
  %v544 = vpop.f32.mrb[0].mxu0
  %v545 = vadd.f32 %v222, %v544
  %v546 = vpop.f32.mrb[0].mxu0
  %547 = vmatprep.mubr.bf16.mxu0 0
  %548 = vmatmul.mubr.bf16.gmra.mrb[0].mxu0 %v413
  %v549 = vpop.f32.mrb[0].mxu0
  %v550 = vadd.f32 %v227, %v549
  %v551 = vpop.f32.mrb[0].mxu0
  %v552 = vpop.f32.mrb[0].mxu0
  %v553 = vadd.f32 %v232, %v552
  %v554 = vpop.f32.mrb[0].mxu0
  %555 = vmatprep.mubr.bf16.mxu0 0
  %556 = vmatmul.mubr.bf16.gmra.mrb[0].mxu0 %v416
  %v557 = vpop.f32.mrb[0].mxu0
  %v558 = vadd.f32 %v237, %v557
  %v559 = vpop.f32.mrb[0].mxu0
  %v560 = vpop.f32.mrb[0].mxu0
  %v561 = vadd.f32 %v242, %v560
  %v562 = vpop.f32.mrb[0].mxu0
  %563 = vmatprep.mubr.bf16.mxu0 0
  %564 = vmatmul.mubr.bf16.gmra.mrb[0].mxu0 %v419
  %v565 = vpop.f32.mrb[0].mxu0
  %v566 = vadd.f32 %v247, %v565
  %v567 = vpop.f32.mrb[0].mxu0
  %v568 = vpop.f32.mrb[0].mxu0
  %v569 = vadd.f32 %v252, %v568
  %v570 = vpop.f32.mrb[0].mxu0
  %571 = vmatprep.mubr.bf16.mxu0 0
  %572 = vmatmul.mubr.bf16.gmra.mrb[0].mxu0 %v422
  %v573 = vpop.f32.mrb[0].mxu0
  %v574 = vadd.f32 %v257, %v573
  %v575 = vpop.f32.mrb[0].mxu0
  %v576 = vpop.f32.mrb[0].mxu0
  %v577 = vadd.f32 %v262, %v576
  %v578 = vpop.f32.mrb[0].mxu0
  %579 = vmatprep.mubr.bf16.mxu0 0
  %580 = vmatmul.mubr.bf16.gmra.mrb[0].mxu0 %v425
  %v581 = vpop.f32.mrb[0].mxu0
  %v582 = vadd.f32 %v267, %v581
  %v583 = vpop.f32.mrb[0].mxu0
  %v584 = vpop.f32.mrb[0].mxu0
  %v585 = vadd.f32 %v272, %v584
  %v586 = vpop.f32.mrb[0].mxu0
  %587 = vdwg.mxu0
  %v588 = vmax.f32 %v462, 0.0
  %v589 = vmax.f32 %v465, 0.0
  %v590 = vmax.f32 %v470, 0.0
  %v591 = vmax.f32 %v473, 0.0
  %v592 = vmax.f32 %v478, 0.0
  %v593 = vmax.f32 %v481, 0.0
  %v594 = vmax.f32 %v486, 0.0
  %v595 = vmax.f32 %v489, 0.0
  %v596 = vmax.f32 %v494, 0.0
  %v597 = vmax.f32 %v497, 0.0
  %v598 = vmax.f32 %v502, 0.0
  %v599 = vmax.f32 %v505, 0.0
  %v600 = vmax.f32 %v510, 0.0
  %v601 = vmax.f32 %v513, 0.0
  %v602 = vmax.f32 %v518, 0.0
  %v603 = vmax.f32 %v521, 0.0
  %v604 = vmax.f32 %v526, 0.0
  %v605 = vmax.f32 %v529, 0.0
  %v606 = vmax.f32 %v534, 0.0
  %v607 = vmax.f32 %v537, 0.0
  %v608 = vmax.f32 %v542, 0.0
  %v609 = vmax.f32 %v545, 0.0
  %v610 = vmax.f32 %v550, 0.0
  %v611 = vmax.f32 %v553, 0.0
  %v612 = vmax.f32 %v558, 0.0
  %v613 = vmax.f32 %v561, 0.0
  %v614 = vmax.f32 %v566, 0.0
  %v615 = vmax.f32 %v569, 0.0
  %v616 = vmax.f32 %v574, 0.0
  %v617 = vmax.f32 %v577, 0.0
  %v618 = vmax.f32 %v582, 0.0
  %v619 = vmax.f32 %v585, 0.0
  %v620 = vld [vmem:[%s5] sm:$0xff]
  %v621 = vld [vmem:[%s5 + $0x8] sm:$0xff]
  %v622 = vld [vmem:[%s5 + $0x10] sm:$0xff]
  %v623 = vld [vmem:[%s5 + $0x18] sm:$0xff]
  %v624 = vld [vmem:[%s5 + $0x20] sm:$0xff]
  %v625 = vld [vmem:[%s5 + $0x28] sm:$0xff]
  %v626 = vld [vmem:[%s5 + $0x30] sm:$0xff]
  %v627 = vld [vmem:[%s5 + $0x38] sm:$0xff]
  %v628 = vld [vmem:[%s5 + $0x40] sm:$0xff]
  %v629 = vld [vmem:[%s5 + $0x48] sm:$0xff]
  %v630 = vld [vmem:[%s5 + $0x50] sm:$0xff]
  %v631 = vld [vmem:[%s5 + $0x58] sm:$0xff]
  %v632 = vld [vmem:[%s5 + $0x60] sm:$0xff]
  %v633 = vld [vmem:[%s5 + $0x68] sm:$0xff]
  %v634 = vld [vmem:[%s5 + $0x70] sm:$0xff]
  %v635 = vld [vmem:[%s5 + $0x78] sm:$0xff]
  %v636 = vpack.c.bf16 %v589, %v588
  %v637 = vpack.c.bf16 %v591, %v590
  %v638 = vpack.c.bf16 %v593, %v592
  %v639 = vpack.c.bf16 %v595, %v594
  %v640 = vpack.c.bf16 %v597, %v596
  %v641 = vpack.c.bf16 %v599, %v598
  %v642 = vpack.c.bf16 %v601, %v600
  %v643 = vpack.c.bf16 %v603, %v602
  %v644 = vpack.c.bf16 %v605, %v604
  %v645 = vpack.c.bf16 %v607, %v606
  %v646 = vpack.c.bf16 %v609, %v608
  %v647 = vpack.c.bf16 %v611, %v610
  %v648 = vpack.c.bf16 %v613, %v612
  %v649 = vpack.c.bf16 %v615, %v614
  %v650 = vpack.c.bf16 %v617, %v616
  %v651 = vpack.c.bf16 %v619, %v618
  %v652 = vld [vmem:[%s6] sm:$0xff]
  %v653 = vld [vmem:[%s6 + $0x8] sm:$0xff]
  %v654 = vld [vmem:[%s6 + $0x10] sm:$0xff]
  %v655 = vld [vmem:[%s6 + $0x18] sm:$0xff]
  %v656 = vld [vmem:[%s6 + $0x20] sm:$0xff]
  %v657 = vld [vmem:[%s6 + $0x28] sm:$0xff]
  %v658 = vld [vmem:[%s6 + $0x30] sm:$0xff]
  %v659 = vld [vmem:[%s6 + $0x38] sm:$0xff]
  %v660 = vld [vmem:[%s6 + $0x40] sm:$0xff]
  %v661 = vld [vmem:[%s6 + $0x48] sm:$0xff]
  %v662 = vld [vmem:[%s6 + $0x50] sm:$0xff]
  %v663 = vld [vmem:[%s6 + $0x58] sm:$0xff]
  %v664 = vld [vmem:[%s6 + $0x60] sm:$0xff]
  %v665 = vld [vmem:[%s6 + $0x68] sm:$0xff]
  %v666 = vld [vmem:[%s6 + $0x70] sm:$0xff]
  %v667 = vld [vmem:[%s6 + $0x78] sm:$0xff]
  %669 = vset.pattern.permute.xlu0 0
  %670 = vperm.xlu0 %669, %v652
  %v671 = vpop.permute.xlu0 %670
  %674 = vset.pattern.permute.xlu0 0
  %675 = vperm.xlu0 %674, %v653
  %v676 = vpop.permute.xlu0 %675
  %679 = vset.pattern.permute.xlu0 0
  %680 = vperm.xlu0 %679, %v654
  %v681 = vpop.permute.xlu0 %680
  %684 = vset.pattern.permute.xlu0 0
  %685 = vperm.xlu0 %684, %v655
  %v686 = vpop.permute.xlu0 %685
  %689 = vset.pattern.permute.xlu0 0
  %690 = vperm.xlu0 %689, %v656
  %v691 = vpop.permute.xlu0 %690
  %694 = vset.pattern.permute.xlu0 0
  %695 = vperm.xlu0 %694, %v657
  %v696 = vpop.permute.xlu0 %695
  %699 = vset.pattern.permute.xlu0 0
  %700 = vperm.xlu0 %699, %v658
  %v701 = vpop.permute.xlu0 %700
  %704 = vset.pattern.permute.xlu0 0
  %705 = vperm.xlu0 %704, %v659
  %v706 = vpop.permute.xlu0 %705
  %709 = vset.pattern.permute.xlu0 0
  %710 = vperm.xlu0 %709, %v660
  %v711 = vpop.permute.xlu0 %710
  %714 = vset.pattern.permute.xlu0 0
  %715 = vperm.xlu0 %714, %v661
  %v716 = vpop.permute.xlu0 %715
  %719 = vset.pattern.permute.xlu0 0
  %720 = vperm.xlu0 %719, %v662
  %v721 = vpop.permute.xlu0 %720
  %724 = vset.pattern.permute.xlu0 0
  %725 = vperm.xlu0 %724, %v663
  %v726 = vpop.permute.xlu0 %725
  %729 = vset.pattern.permute.xlu0 0
  %730 = vperm.xlu0 %729, %v664
  %v731 = vpop.permute.xlu0 %730
  %734 = vset.pattern.permute.xlu0 0
  %735 = vperm.xlu0 %734, %v665
  %v736 = vpop.permute.xlu0 %735
  %739 = vset.pattern.permute.xlu0 0
  %740 = vperm.xlu0 %739, %v666
  %v741 = vpop.permute.xlu0 %740
  %744 = vset.pattern.permute.xlu0 0
  %745 = vperm.xlu0 %744, %v667
  %v746 = vpop.permute.xlu0 %745
  %v764 = vunpack.c.l.b16 %v620
  %v765 = vunpack.c.h.b16 %v620
  %v766 = vunpack.c.l.b16 %v621
  %v767 = vunpack.c.h.b16 %v621
  %v768 = vunpack.c.l.b16 %v622
  %v769 = vunpack.c.h.b16 %v622
  %v770 = vunpack.c.l.b16 %v623
  %v771 = vunpack.c.h.b16 %v623
  %v772 = vunpack.c.l.b16 %v624
  %v773 = vunpack.c.h.b16 %v624
  %v774 = vunpack.c.l.b16 %v625
  %v775 = vunpack.c.h.b16 %v625
  %v776 = vunpack.c.l.b16 %v626
  %v777 = vunpack.c.h.b16 %v626
  %v778 = vunpack.c.l.b16 %v627
  %v779 = vunpack.c.h.b16 %v627
  %v780 = vunpack.c.l.b16 %v628
  %v781 = vunpack.c.h.b16 %v628
  %v782 = vunpack.c.l.b16 %v629
  %v783 = vunpack.c.h.b16 %v629
  %v784 = vunpack.c.l.b16 %v630
  %v785 = vunpack.c.h.b16 %v630
  %v786 = vunpack.c.l.b16 %v631
  %v787 = vunpack.c.h.b16 %v631
  %v788 = vunpack.c.l.b16 %v632
  %v789 = vunpack.c.h.b16 %v632
  %v790 = vunpack.c.l.b16 %v633
  %v791 = vunpack.c.h.b16 %v633
  %v792 = vunpack.c.l.b16 %v634
  %v793 = vunpack.c.h.b16 %v634
  %v794 = vunpack.c.l.b16 %v635
  %v795 = vunpack.c.h.b16 %v635
  %v796 = vpack.c.b16 %v766, %v764
  %v797 = vpack.c.b16 %v767, %v765
  %v798 = vpack.c.b16 %v770, %v768
  %v799 = vpack.c.b16 %v771, %v769
  %v800 = vpack.c.b16 %v774, %v772
  %v801 = vpack.c.b16 %v775, %v773
  %v802 = vpack.c.b16 %v778, %v776
  %v803 = vpack.c.b16 %v779, %v777
  %v804 = vpack.c.b16 %v782, %v780
  %v805 = vpack.c.b16 %v783, %v781
  %v806 = vpack.c.b16 %v786, %v784
  %v807 = vpack.c.b16 %v787, %v785
  %v808 = vpack.c.b16 %v790, %v788
  %v809 = vpack.c.b16 %v791, %v789
  %v810 = vpack.c.b16 %v794, %v792
  %v811 = vpack.c.b16 %v795, %v793
  %828 = vmatprep.subr.bf16.mxu0 0
  %829 = vmatpush1.bf16.msra.mxu0 %v636
  %830 = vmatprep.subr.bf16.mxu0 0
  %831 = vmatpush1.bf16.msra.mxu0 %v637
  %832 = vmatprep.subr.bf16.mxu0 0
  %833 = vmatpush1.bf16.msra.mxu0 %v638
  %834 = vmatprep.subr.bf16.mxu0 0
  %835 = vmatpush1.bf16.msra.mxu0 %v639
  %836 = vmatprep.subr.bf16.mxu0 0
  %837 = vmatpush1.bf16.msra.mxu0 %v640
  %838 = vmatprep.subr.bf16.mxu0 0
  %839 = vmatpush1.bf16.msra.mxu0 %v641
  %840 = vmatprep.subr.bf16.mxu0 0
  %841 = vmatpush1.bf16.msra.mxu0 %v642
  %842 = vmatprep.subr.bf16.mxu0 0
  %843 = vmatpush1.bf16.msra.mxu0 %v643
  %844 = vmatprep.subr.bf16.mxu0 0
  %845 = vmatpush1.bf16.msra.mxu0 %v644
  %846 = vmatprep.subr.bf16.mxu0 0
  %847 = vmatpush1.bf16.msra.mxu0 %v645
  %848 = vmatprep.subr.bf16.mxu0 0
  %849 = vmatpush1.bf16.msra.mxu0 %v646
  %850 = vmatprep.subr.bf16.mxu0 0
  %851 = vmatpush1.bf16.msra.mxu0 %v647
  %852 = vmatprep.subr.bf16.mxu0 0
  %853 = vmatpush1.bf16.msra.mxu0 %v648
  %854 = vmatprep.subr.bf16.mxu0 0
  %855 = vmatpush1.bf16.msra.mxu0 %v649
  %856 = vmatprep.subr.bf16.mxu0 0
  %857 = vmatpush1.bf16.msra.mxu0 %v650
  %858 = vmatprep.subr.bf16.mxu0 0
  %859 = vmatpush1.bf16.msra.mxu0 %v651
  %860 = vmatprep.mubr.bf16.mxu0 %v797
  %861 = vmatmul.mubr.bf16.gmra.mrb[0].mxu0 %v796
  %v862 = vpop.f32.mrb[0].mxu0
  %v863 = vadd.f32 %v671, %v862
  %v864 = vpop.f32.mrb[0].mxu0
  %v865 = vpop.f32.mrb[0].mxu0
  %v866 = vadd.f32 %v676, %v865
  %v867 = vpop.f32.mrb[0].mxu0
  %868 = vmatprep.mubr.bf16.mxu0 %v799
  %869 = vmatmul.mubr.bf16.gmra.mrb[0].mxu0 %v798
  %v870 = vpop.f32.mrb[0].mxu0
  %v871 = vadd.f32 %v681, %v870
  %v872 = vpop.f32.mrb[0].mxu0
  %v873 = vpop.f32.mrb[0].mxu0
  %v874 = vadd.f32 %v686, %v873
  %v875 = vpop.f32.mrb[0].mxu0
  %876 = vmatprep.mubr.bf16.mxu0 %v801
  %877 = vmatmul.mubr.bf16.gmra.mrb[0].mxu0 %v800
  %v878 = vpop.f32.mrb[0].mxu0
  %v879 = vadd.f32 %v691, %v878
  %v880 = vpop.f32.mrb[0].mxu0
  %v881 = vpop.f32.mrb[0].mxu0
  %v882 = vadd.f32 %v696, %v881
  %v883 = vpop.f32.mrb[0].mxu0
  %884 = vmatprep.mubr.bf16.mxu0 %v803
  %885 = vmatmul.mubr.bf16.gmra.mrb[0].mxu0 %v802
  %v886 = vpop.f32.mrb[0].mxu0
  %v887 = vadd.f32 %v701, %v886
  %v888 = vpop.f32.mrb[0].mxu0
  %v889 = vpop.f32.mrb[0].mxu0
  %v890 = vadd.f32 %v706, %v889
  %v891 = vpop.f32.mrb[0].mxu0
  %892 = vmatprep.mubr.bf16.mxu0 %v805
  %893 = vmatmul.mubr.bf16.gmra.mrb[0].mxu0 %v804
  %v894 = vpop.f32.mrb[0].mxu0
  %v895 = vadd.f32 %v711, %v894
  %v896 = vpop.f32.mrb[0].mxu0
  %v897 = vpop.f32.mrb[0].mxu0
  %v898 = vadd.f32 %v716, %v897
  %v899 = vpop.f32.mrb[0].mxu0
  %900 = vmatprep.mubr.bf16.mxu0 %v807
  %901 = vmatmul.mubr.bf16.gmra.mrb[0].mxu0 %v806
  %v902 = vpop.f32.mrb[0].mxu0
  %v903 = vadd.f32 %v721, %v902
  %v904 = vpop.f32.mrb[0].mxu0
  %v905 = vpop.f32.mrb[0].mxu0
  %v906 = vadd.f32 %v726, %v905
  %v907 = vpop.f32.mrb[0].mxu0
  %908 = vmatprep.mubr.bf16.mxu0 %v809
  %909 = vmatmul.mubr.bf16.gmra.mrb[0].mxu0 %v808
  %v910 = vpop.f32.mrb[0].mxu0
  %v911 = vadd.f32 %v731, %v910
  %v912 = vpop.f32.mrb[0].mxu0
  %v913 = vpop.f32.mrb[0].mxu0
  %v914 = vadd.f32 %v736, %v913
  %v915 = vpop.f32.mrb[0].mxu0
  %916 = vmatprep.mubr.bf16.mxu0 %v811
  %917 = vmatmul.mubr.bf16.gmra.mrb[0].mxu0 %v810
  %v918 = vpop.f32.mrb[0].mxu0
  %v919 = vadd.f32 %v741, %v918
  %v920 = vpop.f32.mrb[0].mxu0
  %v921 = vpop.f32.mrb[0].mxu0
  %v922 = vadd.f32 %v746, %v921
  %v923 = vpop.f32.mrb[0].mxu0
  %924 = vdwg.mxu0
  %v925 = vmax.f32 %v863, 0.0
  %v926 = vmax.f32 %v866, 0.0
  %v927 = vmax.f32 %v871, 0.0
  %v928 = vmax.f32 %v874, 0.0
  %v929 = vmax.f32 %v879, 0.0
  %v930 = vmax.f32 %v882, 0.0
  %v931 = vmax.f32 %v887, 0.0
  %v932 = vmax.f32 %v890, 0.0
  %v933 = vmax.f32 %v895, 0.0
  %v934 = vmax.f32 %v898, 0.0
  %v935 = vmax.f32 %v903, 0.0
  %v936 = vmax.f32 %v906, 0.0
  %v937 = vmax.f32 %v911, 0.0
  %v938 = vmax.f32 %v914, 0.0
  %v939 = vmax.f32 %v919, 0.0
  %v940 = vmax.f32 %v922, 0.0
  %v941 = vld [vmem:[%s7] sm:$0xf]
  %v942 = vld [vmem:[%s7 + $0x4] sm:$0xf]
  %v943 = vld [vmem:[%s7 + $0x8] sm:$0xf]
  %v944 = vld [vmem:[%s7 + $0xc] sm:$0xf]
  %v945 = vld [vmem:[%s7 + $0x10] sm:$0xf]
  %v946 = vld [vmem:[%s7 + $0x14] sm:$0xf]
  %v947 = vld [vmem:[%s7 + $0x18] sm:$0xf]
  %v948 = vld [vmem:[%s7 + $0x1c] sm:$0xf]
  %v949 = vld [vmem:[%s7 + $0x20] sm:$0xf]
  %v950 = vld [vmem:[%s7 + $0x24] sm:$0xf]
  %v951 = vld [vmem:[%s7 + $0x28] sm:$0xf]
  %v952 = vld [vmem:[%s7 + $0x2c] sm:$0xf]
  %v953 = vld [vmem:[%s7 + $0x30] sm:$0xf]
  %v954 = vld [vmem:[%s7 + $0x34] sm:$0xf]
  %v955 = vld [vmem:[%s7 + $0x38] sm:$0xf]
  %v956 = vld [vmem:[%s7 + $0x3c] sm:$0xf]
  %v957 = vpack.c.bf16 %v926, %v925
  %v958 = vpack.c.bf16 %v928, %v927
  %v959 = vpack.c.bf16 %v930, %v929
  %v960 = vpack.c.bf16 %v932, %v931
  %v961 = vpack.c.bf16 %v934, %v933
  %v962 = vpack.c.bf16 %v936, %v935
  %v963 = vpack.c.bf16 %v938, %v937
  %v964 = vpack.c.bf16 %v940, %v939
  %v981 = vunpack.c.l.b16 %v941
  %v982 = vunpack.c.l.b16 %v942
  %v983 = vunpack.c.l.b16 %v943
  %v984 = vunpack.c.l.b16 %v944
  %v985 = vunpack.c.l.b16 %v945
  %v986 = vunpack.c.l.b16 %v946
  %v987 = vunpack.c.l.b16 %v947
  %v988 = vunpack.c.l.b16 %v948
  %v989 = vunpack.c.l.b16 %v949
  %v990 = vunpack.c.l.b16 %v950
  %v991 = vunpack.c.l.b16 %v951
  %v992 = vunpack.c.l.b16 %v952
  %v993 = vunpack.c.l.b16 %v953
  %v994 = vunpack.c.l.b16 %v954
  %v995 = vunpack.c.l.b16 %v955
  %v996 = vunpack.c.l.b16 %v956
  %v997 = vpack.c.b16 %v982, %v981
  %v998 = vpack.c.b16 %v984, %v983
  %v999 = vpack.c.b16 %v986, %v985
  %v1000 = vpack.c.b16 %v988, %v987
  %v1001 = vpack.c.b16 %v990, %v989
  %v1002 = vpack.c.b16 %v992, %v991
  %v1003 = vpack.c.b16 %v994, %v993
  %v1004 = vpack.c.b16 %v996, %v995
  %1013 = vmatprep.subr.bf16.mxu0 0
  %1014 = vmatpush1.bf16.msra.mxu0 %v957
  %1015 = vmatprep.subr.bf16.mxu0 0
  %1016 = vmatpush1.bf16.msra.mxu0 %v958
  %1017 = vmatprep.subr.bf16.mxu0 0
  %1018 = vmatpush1.bf16.msra.mxu0 %v959
  %1019 = vmatprep.subr.bf16.mxu0 0
  %1020 = vmatpush1.bf16.msra.mxu0 %v960
  %1021 = vmatprep.subr.bf16.mxu0 0
  %1022 = vmatpush1.bf16.msra.mxu0 %v961
  %1023 = vmatprep.subr.bf16.mxu0 0
  %1024 = vmatpush1.bf16.msra.mxu0 %v962
  %1025 = vmatprep.subr.bf16.mxu0 0
  %1026 = vmatpush1.bf16.msra.mxu0 %v963
  %1027 = vmatprep.subr.bf16.mxu0 0
  %1028 = vmatpush1.bf16.msra.mxu0 %v964
  %1029 = vmatprep.subr.bf16.mxu0 0
  %1030 = vmatpush1.bf16.msra.mxu0 0
  %1031 = vmatprep.subr.bf16.mxu0 0
  %1032 = vmatpush1.bf16.msra.mxu0 0
  %1033 = vmatprep.subr.bf16.mxu0 0
  %1034 = vmatpush1.bf16.msra.mxu0 0
  %1035 = vmatprep.subr.bf16.mxu0 0
  %1036 = vmatpush1.bf16.msra.mxu0 0
  %1037 = vmatprep.subr.bf16.mxu0 0
  %1038 = vmatpush1.bf16.msra.mxu0 0
  %1039 = vmatprep.subr.bf16.mxu0 0
  %1040 = vmatpush1.bf16.msra.mxu0 0
  %1041 = vmatprep.subr.bf16.mxu0 0
  %1042 = vmatpush1.bf16.msra.mxu0 0
  %1043 = vmatprep.subr.bf16.mxu0 0
  %1044 = vmatpush1.bf16.msra.mxu0 0
  %1045 = vmatprep.mubr.bf16.mxu0 0
  %1046 = vmatmul.mubr.bf16.gmra.mrb[0].mxu0 %v997
  %v1047 = vpop.f32.mrb[0].mxu0
  %v1048 = vadd.f32 0.0, %v1047
  %v1049 = vpop.f32.mrb[0].mxu0
  %v1050 = vpop.f32.mrb[0].mxu0
  %v1051 = vadd.f32 0.0, %v1050
  %v1052 = vpop.f32.mrb[0].mxu0
  %1053 = vmatprep.mubr.bf16.mxu0 0
  %1054 = vmatmul.mubr.bf16.gmra.mrb[0].mxu0 %v998
  %v1055 = vpop.f32.mrb[0].mxu0
  %v1056 = vadd.f32 0.0, %v1055
  %v1057 = vpop.f32.mrb[0].mxu0
  %v1058 = vpop.f32.mrb[0].mxu0
  %v1059 = vadd.f32 0.0, %v1058
  %v1060 = vpop.f32.mrb[0].mxu0
  %1061 = vmatprep.mubr.bf16.mxu0 0
  %1062 = vmatmul.mubr.bf16.gmra.mrb[0].mxu0 %v999
  %v1063 = vpop.f32.mrb[0].mxu0
  %v1064 = vadd.f32 0.0, %v1063
  %v1065 = vpop.f32.mrb[0].mxu0
  %v1066 = vpop.f32.mrb[0].mxu0
  %v1067 = vadd.f32 0.0, %v1066
  %v1068 = vpop.f32.mrb[0].mxu0
  %1069 = vmatprep.mubr.bf16.mxu0 0
  %1070 = vmatmul.mubr.bf16.gmra.mrb[0].mxu0 %v1000
  %v1071 = vpop.f32.mrb[0].mxu0
  %v1072 = vadd.f32 0.0, %v1071
  %v1073 = vpop.f32.mrb[0].mxu0
  %v1074 = vpop.f32.mrb[0].mxu0
  %v1075 = vadd.f32 0.0, %v1074
  %v1076 = vpop.f32.mrb[0].mxu0
  %1077 = vmatprep.mubr.bf16.mxu0 0
  %1078 = vmatmul.mubr.bf16.gmra.mrb[0].mxu0 %v1001
  %v1079 = vpop.f32.mrb[0].mxu0
  %v1080 = vadd.f32 0.0, %v1079
  %v1081 = vpop.f32.mrb[0].mxu0
  %v1082 = vpop.f32.mrb[0].mxu0
  %v1083 = vadd.f32 0.0, %v1082
  %v1084 = vpop.f32.mrb[0].mxu0
  %1085 = vmatprep.mubr.bf16.mxu0 0
  %1086 = vmatmul.mubr.bf16.gmra.mrb[0].mxu0 %v1002
  %v1087 = vpop.f32.mrb[0].mxu0
  %v1088 = vadd.f32 0.0, %v1087
  %v1089 = vpop.f32.mrb[0].mxu0
  %v1090 = vpop.f32.mrb[0].mxu0
  %v1091 = vadd.f32 0.0, %v1090
  %v1092 = vpop.f32.mrb[0].mxu0
  %1093 = vmatprep.mubr.bf16.mxu0 0
  %1094 = vmatmul.mubr.bf16.gmra.mrb[0].mxu0 %v1003
  %v1095 = vpop.f32.mrb[0].mxu0
  %v1096 = vadd.f32 0.0, %v1095
  %v1097 = vpop.f32.mrb[0].mxu0
  %v1098 = vpop.f32.mrb[0].mxu0
  %v1099 = vadd.f32 0.0, %v1098
  %v1100 = vpop.f32.mrb[0].mxu0
  %1101 = vmatprep.mubr.bf16.mxu0 0
  %1102 = vmatmul.mubr.bf16.gmra.mrb[0].mxu0 %v1004
  %v1103 = vpop.f32.mrb[0].mxu0
  %v1104 = vadd.f32 0.0, %v1103
  %v1105 = vpop.f32.mrb[0].mxu0
  %v1106 = vpop.f32.mrb[0].mxu0
  %v1107 = vadd.f32 0.0, %v1106
  %v1108 = vpop.f32.mrb[0].mxu0
  %1109 = vdwg.mxu0
  %v1110 = vld [vmem:[%s2] sm:$0xf]
  %v1111 = vld [vmem:[%s2 + $0x4] sm:$0xf]
  %v1112 = vld [vmem:[%s2 + $0x8] sm:$0xf]
  %v1113 = vld [vmem:[%s2 + $0xc] sm:$0xf]
  %v1114 = vld [vmem:[%s2 + $0x10] sm:$0xf]
  %v1115 = vld [vmem:[%s2 + $0x14] sm:$0xf]
  %v1116 = vld [vmem:[%s2 + $0x18] sm:$0xf]
  %v1117 = vld [vmem:[%s2 + $0x1c] sm:$0xf]
  %v1118 = vld [vmem:[%s8] sm:$0xf]
  %v1119 = vld [vmem:[%s8 + $0x4] sm:$0xf]
  %v1120 = vld [vmem:[%s8 + $0x8] sm:$0xf]
  %v1121 = vld [vmem:[%s8 + $0xc] sm:$0xf]
  %v1122 = vld [vmem:[%s8 + $0x10] sm:$0xf]
  %v1123 = vld [vmem:[%s8 + $0x14] sm:$0xf]
  %v1124 = vld [vmem:[%s8 + $0x18] sm:$0xf]
  %v1125 = vld [vmem:[%s8 + $0x1c] sm:$0xf]
  %v1126 = vld [vmem:[%s9] sm:$0xff]
  %v1127 = vld [vmem:[%s9 + $0x8] sm:$0xff]
  %v1128 = vld [vmem:[%s9 + $0x10] sm:$0xff]
  %v1129 = vld [vmem:[%s9 + $0x18] sm:$0xff]
  %v1130 = vld [vmem:[%s9 + $0x20] sm:$0xff]
  %v1131 = vld [vmem:[%s9 + $0x28] sm:$0xff]
  %v1132 = vld [vmem:[%s9 + $0x30] sm:$0xff]
  %v1133 = vld [vmem:[%s9 + $0x38] sm:$0xff]
  %1135 = vset.pattern.permute.xlu0 0
  %1136 = vperm.xlu0 %1135, %v1126
  %v1137 = vpop.permute.xlu0 %1136
  %1140 = vset.pattern.permute.xlu0 0
  %1141 = vperm.xlu0 %1140, %v1127
  %v1142 = vpop.permute.xlu0 %1141
  %1145 = vset.pattern.permute.xlu0 0
  %1146 = vperm.xlu0 %1145, %v1128
  %v1147 = vpop.permute.xlu0 %1146
  %1150 = vset.pattern.permute.xlu0 0
  %1151 = vperm.xlu0 %1150, %v1129
  %v1152 = vpop.permute.xlu0 %1151
  %1155 = vset.pattern.permute.xlu0 0
  %1156 = vperm.xlu0 %1155, %v1130
  %v1157 = vpop.permute.xlu0 %1156
  %1160 = vset.pattern.permute.xlu0 0
  %1161 = vperm.xlu0 %1160, %v1131
  %v1162 = vpop.permute.xlu0 %1161
  %1165 = vset.pattern.permute.xlu0 0
  %1166 = vperm.xlu0 %1165, %v1132
  %v1167 = vpop.permute.xlu0 %1166
  %1170 = vset.pattern.permute.xlu0 0
  %1171 = vperm.xlu0 %1170, %v1133
  %v1172 = vpop.permute.xlu0 %1171
  %v1182 = vunpack.c.l.b16 %v1118
  %v1183 = vunpack.c.l.b16 %v1119
  %v1184 = vunpack.c.l.b16 %v1120
  %v1185 = vunpack.c.l.b16 %v1121
  %v1186 = vunpack.c.l.b16 %v1122
  %v1187 = vunpack.c.l.b16 %v1123
  %v1188 = vunpack.c.l.b16 %v1124
  %v1189 = vunpack.c.l.b16 %v1125
  %v1190 = vpack.c.b16 %v1183, %v1182
  %v1191 = vpack.c.b16 %v1185, %v1184
  %v1192 = vpack.c.b16 %v1187, %v1186
  %v1193 = vpack.c.b16 %v1189, %v1188
  %v1202 = vunpack.c.l.b16 %v1110
  %v1203 = vunpack.c.l.b16 %v1111
  %v1204 = vunpack.c.l.b16 %v1112
  %v1205 = vunpack.c.l.b16 %v1113
  %v1206 = vunpack.c.l.b16 %v1114
  %v1207 = vunpack.c.l.b16 %v1115
  %v1208 = vunpack.c.l.b16 %v1116
  %v1209 = vunpack.c.l.b16 %v1117
  %v1210 = vpack.c.b16 %v1203, %v1202
  %v1211 = vpack.c.b16 %v1205, %v1204
  %v1212 = vpack.c.b16 %v1207, %v1206
  %v1213 = vpack.c.b16 %v1209, %v1208
  %v1219 = vsel %vm378, %v1190, 0
  %v1222 = vsel %vm378, %v1191, 0
  %v1225 = vsel %vm378, %v1192, 0
  %v1228 = vsel %vm378, %v1193, 0
  %1230 = vmatprep.subr.bf16.mxu0 0
  %1231 = vmatpush1.bf16.msra.mxu0 %v1210
  %1232 = vmatprep.subr.bf16.mxu0 0
  %1233 = vmatpush1.bf16.msra.mxu0 %v1211
  %1234 = vmatprep.subr.bf16.mxu0 0
  %1235 = vmatpush1.bf16.msra.mxu0 %v1212
  %1236 = vmatprep.subr.bf16.mxu0 0
  %1237 = vmatpush1.bf16.msra.mxu0 %v1213
  %1238 = vmatprep.subr.bf16.mxu0 0
  %1239 = vmatpush1.bf16.msra.mxu0 0
  %1240 = vmatprep.subr.bf16.mxu0 0
  %1241 = vmatpush1.bf16.msra.mxu0 0
  %1242 = vmatprep.subr.bf16.mxu0 0
  %1243 = vmatpush1.bf16.msra.mxu0 0
  %1244 = vmatprep.subr.bf16.mxu0 0
  %1245 = vmatpush1.bf16.msra.mxu0 0
  %1246 = vmatprep.subr.bf16.mxu0 0
  %1247 = vmatpush1.bf16.msra.mxu0 0
  %1248 = vmatprep.subr.bf16.mxu0 0
  %1249 = vmatpush1.bf16.msra.mxu0 0
  %1250 = vmatprep.subr.bf16.mxu0 0
  %1251 = vmatpush1.bf16.msra.mxu0 0
  %1252 = vmatprep.subr.bf16.mxu0 0
  %1253 = vmatpush1.bf16.msra.mxu0 0
  %1254 = vmatprep.subr.bf16.mxu0 0
  %1255 = vmatpush1.bf16.msra.mxu0 0
  %1256 = vmatprep.subr.bf16.mxu0 0
  %1257 = vmatpush1.bf16.msra.mxu0 0
  %1258 = vmatprep.subr.bf16.mxu0 0
  %1259 = vmatpush1.bf16.msra.mxu0 0
  %1260 = vmatprep.subr.bf16.mxu0 0
  %1261 = vmatpush1.bf16.msra.mxu0 0
  %1262 = vmatprep.mubr.bf16.mxu0 0
  %1263 = vmatmul.mubr.bf16.gmra.mrb[0].mxu0 %v1219
  %v1264 = vpop.f32.mrb[0].mxu0
  %v1265 = vadd.f32 %v1137, %v1264
  %v1266 = vpop.f32.mrb[0].mxu0
  %v1267 = vpop.f32.mrb[0].mxu0
  %v1268 = vadd.f32 %v1142, %v1267
  %v1269 = vpop.f32.mrb[0].mxu0
  %1270 = vmatprep.mubr.bf16.mxu0 0
  %1271 = vmatmul.mubr.bf16.gmra.mrb[0].mxu0 %v1222
  %v1272 = vpop.f32.mrb[0].mxu0
  %v1273 = vadd.f32 %v1147, %v1272
  %v1274 = vpop.f32.mrb[0].mxu0
  %v1275 = vpop.f32.mrb[0].mxu0
  %v1276 = vadd.f32 %v1152, %v1275
  %v1277 = vpop.f32.mrb[0].mxu0
  %1278 = vmatprep.mubr.bf16.mxu0 0
  %1279 = vmatmul.mubr.bf16.gmra.mrb[0].mxu0 %v1225
  %v1280 = vpop.f32.mrb[0].mxu0
  %v1281 = vadd.f32 %v1157, %v1280
  %v1282 = vpop.f32.mrb[0].mxu0
  %v1283 = vpop.f32.mrb[0].mxu0
  %v1284 = vadd.f32 %v1162, %v1283
  %v1285 = vpop.f32.mrb[0].mxu0
  %1286 = vmatprep.mubr.bf16.mxu0 0
  %1287 = vmatmul.mubr.bf16.gmra.mrb[0].mxu0 %v1228
  %v1288 = vpop.f32.mrb[0].mxu0
  %v1289 = vadd.f32 %v1167, %v1288
  %v1290 = vpop.f32.mrb[0].mxu0
  %v1291 = vpop.f32.mrb[0].mxu0
  %v1292 = vadd.f32 %v1172, %v1291
  %v1293 = vpop.f32.mrb[0].mxu0
  %1294 = vdwg.mxu0
  %v1295 = vmax.f32 %v1265, 0.0
  %v1296 = vmax.f32 %v1268, 0.0
  %v1297 = vmax.f32 %v1273, 0.0
  %v1298 = vmax.f32 %v1276, 0.0
  %v1299 = vmax.f32 %v1281, 0.0
  %v1300 = vmax.f32 %v1284, 0.0
  %v1301 = vmax.f32 %v1289, 0.0
  %v1302 = vmax.f32 %v1292, 0.0
  %v1303 = vld [vmem:[%s10] sm:$0xf]
  %v1304 = vpack.c.bf16 %v1296, %v1295
  %v1305 = vpack.c.bf16 %v1298, %v1297
  %v1306 = vpack.c.bf16 %v1300, %v1299
  %v1307 = vpack.c.bf16 %v1302, %v1301
  %v1308 = vld [vmem:[%s11] sm:$0xff]
  %1310 = vset.pattern.permute.xlu0 0
  %1311 = vperm.xlu0 %1310, %v1308
  %v1312 = vpop.permute.xlu0 %1311
  %v1315 = vsel %vm378, %v1303, 0
  %1317 = vmatprep.subr.bf16.mxu0 0
  %1318 = vmatpush1.bf16.msra.mxu0 %v1304
  %1319 = vmatprep.subr.bf16.mxu0 0
  %1320 = vmatpush1.bf16.msra.mxu0 %v1305
  %1321 = vmatprep.subr.bf16.mxu0 0
  %1322 = vmatpush1.bf16.msra.mxu0 %v1306
  %1323 = vmatprep.subr.bf16.mxu0 0
  %1324 = vmatpush1.bf16.msra.mxu0 %v1307
  %1325 = vmatprep.subr.bf16.mxu0 0
  %1326 = vmatpush1.bf16.msra.mxu0 0
  %1327 = vmatprep.subr.bf16.mxu0 0
  %1328 = vmatpush1.bf16.msra.mxu0 0
  %1329 = vmatprep.subr.bf16.mxu0 0
  %1330 = vmatpush1.bf16.msra.mxu0 0
  %1331 = vmatprep.subr.bf16.mxu0 0
  %1332 = vmatpush1.bf16.msra.mxu0 0
  %1333 = vmatprep.subr.bf16.mxu0 0
  %1334 = vmatpush1.bf16.msra.mxu0 0
  %1335 = vmatprep.subr.bf16.mxu0 0
  %1336 = vmatpush1.bf16.msra.mxu0 0
  %1337 = vmatprep.subr.bf16.mxu0 0
  %1338 = vmatpush1.bf16.msra.mxu0 0
  %1339 = vmatprep.subr.bf16.mxu0 0
  %1340 = vmatpush1.bf16.msra.mxu0 0
  %1341 = vmatprep.subr.bf16.mxu0 0
  %1342 = vmatpush1.bf16.msra.mxu0 0
  %1343 = vmatprep.subr.bf16.mxu0 0
  %1344 = vmatpush1.bf16.msra.mxu0 0
  %1345 = vmatprep.subr.bf16.mxu0 0
  %1346 = vmatpush1.bf16.msra.mxu0 0
  %1347 = vmatprep.subr.bf16.mxu0 0
  %1348 = vmatpush1.bf16.msra.mxu0 0
  %1349 = vmatprep.mubr.bf16.mxu0 0
  %1350 = vmatmul.mubr.bf16.gmra.mrb[0].mxu0 %v1315
  %v1351 = vpop.f32.mrb[0].mxu0
  %v1352 = vadd.f32 %v1312, %v1351
  %v1353 = vpop.f32.mrb[0].mxu0
  %v1354 = vpop.f32.mrb[0].mxu0
  %v1355 = vpop.f32.mrb[0].mxu0
  %1356 = vdwg.mxu0
  %v1357 = vand.u32 2147483647, %v1352
  %v1358 = vld [vmem:[%s1] sm:$0xf]
  %v1359 = vmul.f32 %v1048, %v1056
  %v1360 = vmul.f32 %v1051, %v1059
  %v1361 = vadd.f32 %v1359, %v1360
  %v1362 = vrot.slane %v1361, 4
  %v1363 = vadd.f32 %v1361, %v1362
  %v1364 = vrot.slane %v1363, 2
  %v1365 = vadd.f32 %v1363, %v1364
  %v1366 = vrot.slane %v1365, 1
  %v1367 = vadd.f32 %v1365, %v1366
  %v1368 = vmul.f32 %v1367, 0.25
  %v1369 = vmul.f32 %v1048, %v1072
  %v1370 = vmul.f32 %v1051, %v1075
  %v1371 = vadd.f32 %v1369, %v1370
  %v1372 = vrot.slane %v1371, 4
  %v1373 = vadd.f32 %v1371, %v1372
  %v1374 = vrot.slane %v1373, 2
  %v1375 = vadd.f32 %v1373, %v1374
  %v1376 = vrot.slane %v1375, 1
  %v1377 = vadd.f32 %v1375, %v1376
  %v1378 = vmul.f32 %v1377, 0.25
  %v1379 = vmul.f32 %v1048, %v1088
  %v1380 = vmul.f32 %v1051, %v1091
  %v1381 = vadd.f32 %v1379, %v1380
  %v1382 = vrot.slane %v1381, 4
  %v1383 = vadd.f32 %v1381, %v1382
  %v1384 = vrot.slane %v1383, 2
  %v1385 = vadd.f32 %v1383, %v1384
  %v1386 = vrot.slane %v1385, 1
  %v1387 = vadd.f32 %v1385, %v1386
  %v1388 = vmul.f32 %v1387, 0.25
  %v1389 = vmul.f32 %v1048, %v1104
  %v1390 = vmul.f32 %v1051, %v1107
  %v1391 = vadd.f32 %v1389, %v1390
  %v1392 = vrot.slane %v1391, 4
  %v1393 = vadd.f32 %v1391, %v1392
  %v1394 = vrot.slane %v1393, 2
  %v1395 = vadd.f32 %v1393, %v1394
  %v1396 = vrot.slane %v1395, 1
  %v1397 = vadd.f32 %v1395, %v1396
  %v1398 = vmul.f32 %v1397, 0.25
  %v1399 = vmax.f32 %v1368, %v1378
  %v1400 = vmax.f32 %v1399, %v1388
  %v1401 = vmax.f32 %v1400, %v1398
  %v1402 = vsub.f32 %v1368, %v1401
  %v1403 = vmul.f32 %v1402, 1.442695
  %v1404 = vpow.pop %v1403
  %v1405 = vsub.f32 %v1378, %v1401
  %v1406 = vmul.f32 %v1405, 1.442695
  %v1407 = vpow.pop %v1406
  %v1408 = vsub.f32 %v1388, %v1401
  %v1409 = vmul.f32 %v1408, 1.442695
  %v1410 = vpow.pop %v1409
  %v1411 = vsub.f32 %v1398, %v1401
  %v1412 = vmul.f32 %v1411, 1.442695
  %v1413 = vpow.pop %v1412
  %v1414 = vmul.f32 %v1358, %v1404
  %v1415 = vadd.f32 %v1404, %v1407
  %v1416 = vmul.f32 %v1358, %v1407
  %v1418 = vrot.slane %v1416, 1
  %v1420 = vadd.f32 %v1414, %v1418
  %v1421 = vadd.f32 %v1415, %v1410
  %v1422 = vmul.f32 %v1358, %v1410
  %v1424 = vrot.slane %v1422, 2
  %v1426 = vadd.f32 %v1420, %v1424
  %v1427 = vadd.f32 %v1421, %v1413
  %v1428 = vmul.f32 %v1358, %v1413
  %v1430 = vrot.slane %v1428, 3
  %v1432 = vadd.f32 %v1426, %v1430
  %v1433 = vrcp.pop %v1427
  %v1434 = vmul.f32 %v1432, %v1433
  %v1435 = vmax.f32 %v1434, 0.0
  %v1436 = vmul.f32 %v1435, %v1357
  %v1438 = vrot.slane %v1436, 4
  %v1440 = vadd.f32 %v1352, %v1438
  %v1441 = vmul.f32 %v1064, %v1056
  %v1442 = vmul.f32 %v1067, %v1059
  %v1443 = vadd.f32 %v1441, %v1442
  %v1444 = vrot.slane %v1443, 4
  %v1445 = vadd.f32 %v1443, %v1444
  %v1446 = vrot.slane %v1445, 2
  %v1447 = vadd.f32 %v1445, %v1446
  %v1448 = vrot.slane %v1447, 1
  %v1449 = vadd.f32 %v1447, %v1448
  %v1450 = vmul.f32 %v1449, 0.25
  %v1451 = vmul.f32 %v1064, %v1072
  %v1452 = vmul.f32 %v1067, %v1075
  %v1453 = vadd.f32 %v1451, %v1452
  %v1454 = vrot.slane %v1453, 4
  %v1455 = vadd.f32 %v1453, %v1454
  %v1456 = vrot.slane %v1455, 2
  %v1457 = vadd.f32 %v1455, %v1456
  %v1458 = vrot.slane %v1457, 1
  %v1459 = vadd.f32 %v1457, %v1458
  %v1460 = vmul.f32 %v1459, 0.25
  %v1461 = vmul.f32 %v1064, %v1088
  %v1462 = vmul.f32 %v1067, %v1091
  %v1463 = vadd.f32 %v1461, %v1462
  %v1464 = vrot.slane %v1463, 4
  %v1465 = vadd.f32 %v1463, %v1464
  %v1466 = vrot.slane %v1465, 2
  %v1467 = vadd.f32 %v1465, %v1466
  %v1468 = vrot.slane %v1467, 1
  %v1469 = vadd.f32 %v1467, %v1468
  %v1470 = vmul.f32 %v1469, 0.25
  %v1471 = vmul.f32 %v1064, %v1104
  %v1472 = vmul.f32 %v1067, %v1107
  %v1473 = vadd.f32 %v1471, %v1472
  %v1474 = vrot.slane %v1473, 4
  %v1475 = vadd.f32 %v1473, %v1474
  %v1476 = vrot.slane %v1475, 2
  %v1477 = vadd.f32 %v1475, %v1476
  %v1478 = vrot.slane %v1477, 1
  %v1479 = vadd.f32 %v1477, %v1478
  %v1480 = vmul.f32 %v1479, 0.25
  %v1481 = vmax.f32 %v1450, %v1460
  %v1482 = vmax.f32 %v1481, %v1470
  %v1483 = vmax.f32 %v1482, %v1480
  %v1484 = vsub.f32 %v1450, %v1483
  %v1485 = vmul.f32 %v1484, 1.442695
  %v1486 = vpow.pop %v1485
  %v1487 = vsub.f32 %v1460, %v1483
  %v1488 = vmul.f32 %v1487, 1.442695
  %v1489 = vpow.pop %v1488
  %v1490 = vsub.f32 %v1470, %v1483
  %v1491 = vmul.f32 %v1490, 1.442695
  %v1492 = vpow.pop %v1491
  %v1493 = vsub.f32 %v1480, %v1483
  %v1494 = vmul.f32 %v1493, 1.442695
  %v1495 = vpow.pop %v1494
  %v1496 = vmul.f32 %v1358, %v1486
  %v1497 = vadd.f32 %v1486, %v1489
  %v1498 = vmul.f32 %v1358, %v1489
  %v1500 = vrot.slane %v1498, 1
  %v1502 = vadd.f32 %v1496, %v1500
  %v1503 = vadd.f32 %v1497, %v1492
  %v1504 = vmul.f32 %v1358, %v1492
  %v1506 = vrot.slane %v1504, 2
  %v1508 = vadd.f32 %v1502, %v1506
  %v1509 = vadd.f32 %v1503, %v1495
  %v1510 = vmul.f32 %v1358, %v1495
  %v1512 = vrot.slane %v1510, 3
  %v1514 = vadd.f32 %v1508, %v1512
  %v1515 = vrcp.pop %v1509
  %v1516 = vmul.f32 %v1514, %v1515
  %v1517 = vmax.f32 %v1516, 0.0
  %v1519 = vrot.slane %v1357, 1
  %v1521 = vmul.f32 %v1517, %v1519
  %v1523 = vrot.slane %v1521, 4
  %v1525 = vadd.f32 %v1440, %v1523
  %v1526 = vmul.f32 %v1080, %v1056
  %v1527 = vmul.f32 %v1083, %v1059
  %v1528 = vadd.f32 %v1526, %v1527
  %v1529 = vrot.slane %v1528, 4
  %v1530 = vadd.f32 %v1528, %v1529
  %v1531 = vrot.slane %v1530, 2
  %v1532 = vadd.f32 %v1530, %v1531
  %v1533 = vrot.slane %v1532, 1
  %v1534 = vadd.f32 %v1532, %v1533
  %v1535 = vmul.f32 %v1534, 0.25
  %v1536 = vmul.f32 %v1080, %v1072
  %v1537 = vmul.f32 %v1083, %v1075
  %v1538 = vadd.f32 %v1536, %v1537
  %v1539 = vrot.slane %v1538, 4
  %v1540 = vadd.f32 %v1538, %v1539
  %v1541 = vrot.slane %v1540, 2
  %v1542 = vadd.f32 %v1540, %v1541
  %v1543 = vrot.slane %v1542, 1
  %v1544 = vadd.f32 %v1542, %v1543
  %v1545 = vmul.f32 %v1544, 0.25
  %v1546 = vmul.f32 %v1080, %v1088
  %v1547 = vmul.f32 %v1083, %v1091
  %v1548 = vadd.f32 %v1546, %v1547
  %v1549 = vrot.slane %v1548, 4
  %v1550 = vadd.f32 %v1548, %v1549
  %v1551 = vrot.slane %v1550, 2
  %v1552 = vadd.f32 %v1550, %v1551
  %v1553 = vrot.slane %v1552, 1
  %v1554 = vadd.f32 %v1552, %v1553
  %v1555 = vmul.f32 %v1554, 0.25
  %v1556 = vmul.f32 %v1080, %v1104
  %v1557 = vmul.f32 %v1083, %v1107
  %v1558 = vadd.f32 %v1556, %v1557
  %v1559 = vrot.slane %v1558, 4
  %v1560 = vadd.f32 %v1558, %v1559
  %v1561 = vrot.slane %v1560, 2
  %v1562 = vadd.f32 %v1560, %v1561
  %v1563 = vrot.slane %v1562, 1
  %v1564 = vadd.f32 %v1562, %v1563
  %v1565 = vmul.f32 %v1564, 0.25
  %v1566 = vmax.f32 %v1535, %v1545
  %v1567 = vmax.f32 %v1566, %v1555
  %v1568 = vmax.f32 %v1567, %v1565
  %v1569 = vsub.f32 %v1535, %v1568
  %v1570 = vmul.f32 %v1569, 1.442695
  %v1571 = vpow.pop %v1570
  %v1572 = vsub.f32 %v1545, %v1568
  %v1573 = vmul.f32 %v1572, 1.442695
  %v1574 = vpow.pop %v1573
  %v1575 = vsub.f32 %v1555, %v1568
  %v1576 = vmul.f32 %v1575, 1.442695
  %v1577 = vpow.pop %v1576
  %v1578 = vsub.f32 %v1565, %v1568
  %v1579 = vmul.f32 %v1578, 1.442695
  %v1580 = vpow.pop %v1579
  %v1581 = vmul.f32 %v1358, %v1571
  %v1582 = vadd.f32 %v1571, %v1574
  %v1583 = vmul.f32 %v1358, %v1574
  %v1585 = vrot.slane %v1583, 1
  %v1587 = vadd.f32 %v1581, %v1585
  %v1588 = vadd.f32 %v1582, %v1577
  %v1589 = vmul.f32 %v1358, %v1577
  %v1591 = vrot.slane %v1589, 2
  %v1593 = vadd.f32 %v1587, %v1591
  %v1594 = vadd.f32 %v1588, %v1580
  %v1595 = vmul.f32 %v1358, %v1580
  %v1597 = vrot.slane %v1595, 3
  %v1599 = vadd.f32 %v1593, %v1597
  %v1600 = vrcp.pop %v1594
  %v1601 = vmul.f32 %v1599, %v1600
  %v1602 = vmax.f32 %v1601, 0.0
  %v1603 = vrot.slane %v1357, 2
  %v1605 = vmul.f32 %v1602, %v1603
  %v1607 = vrot.slane %v1605, 4
  %v1609 = vadd.f32 %v1525, %v1607
  %v1610 = vmul.f32 %v1096, %v1056
  %v1611 = vmul.f32 %v1099, %v1059
  %v1612 = vadd.f32 %v1610, %v1611
  %v1613 = vrot.slane %v1612, 4
  %v1614 = vadd.f32 %v1612, %v1613
  %v1615 = vrot.slane %v1614, 2
  %v1616 = vadd.f32 %v1614, %v1615
  %v1617 = vrot.slane %v1616, 1
  %v1618 = vadd.f32 %v1616, %v1617
  %v1619 = vmul.f32 %v1618, 0.25
  %v1620 = vmul.f32 %v1096, %v1072
  %v1621 = vmul.f32 %v1099, %v1075
  %v1622 = vadd.f32 %v1620, %v1621
  %v1623 = vrot.slane %v1622, 4
  %v1624 = vadd.f32 %v1622, %v1623
  %v1625 = vrot.slane %v1624, 2
  %v1626 = vadd.f32 %v1624, %v1625
  %v1627 = vrot.slane %v1626, 1
  %v1628 = vadd.f32 %v1626, %v1627
  %v1629 = vmul.f32 %v1628, 0.25
  %v1630 = vmul.f32 %v1096, %v1088
  %v1631 = vmul.f32 %v1099, %v1091
  %v1632 = vadd.f32 %v1630, %v1631
  %v1633 = vrot.slane %v1632, 4
  %v1634 = vadd.f32 %v1632, %v1633
  %v1635 = vrot.slane %v1634, 2
  %v1636 = vadd.f32 %v1634, %v1635
  %v1637 = vrot.slane %v1636, 1
  %v1638 = vadd.f32 %v1636, %v1637
  %v1639 = vmul.f32 %v1638, 0.25
  %v1640 = vmul.f32 %v1096, %v1104
  %v1641 = vmul.f32 %v1099, %v1107
  %v1642 = vadd.f32 %v1640, %v1641
  %v1643 = vrot.slane %v1642, 4
  %v1644 = vadd.f32 %v1642, %v1643
  %v1645 = vrot.slane %v1644, 2
  %v1646 = vadd.f32 %v1644, %v1645
  %v1647 = vrot.slane %v1646, 1
  %v1648 = vadd.f32 %v1646, %v1647
  %v1649 = vmul.f32 %v1648, 0.25
  %v1650 = vmax.f32 %v1619, %v1629
  %v1651 = vmax.f32 %v1650, %v1639
  %v1652 = vmax.f32 %v1651, %v1649
  %v1653 = vsub.f32 %v1619, %v1652
  %v1654 = vmul.f32 %v1653, 1.442695
  %v1655 = vpow.pop %v1654
  %v1656 = vsub.f32 %v1629, %v1652
  %v1657 = vmul.f32 %v1656, 1.442695
  %v1658 = vpow.pop %v1657
  %v1659 = vsub.f32 %v1639, %v1652
  %v1660 = vmul.f32 %v1659, 1.442695
  %v1661 = vpow.pop %v1660
  %v1662 = vsub.f32 %v1649, %v1652
  %v1663 = vmul.f32 %v1662, 1.442695
  %v1664 = vpow.pop %v1663
  %v1665 = vmul.f32 %v1358, %v1655
  %v1666 = vadd.f32 %v1655, %v1658
  %v1667 = vmul.f32 %v1358, %v1658
  %v1669 = vrot.slane %v1667, 1
  %v1671 = vadd.f32 %v1665, %v1669
  %v1672 = vadd.f32 %v1666, %v1661
  %v1673 = vmul.f32 %v1358, %v1661
  %v1675 = vrot.slane %v1673, 2
  %v1677 = vadd.f32 %v1671, %v1675
  %v1678 = vadd.f32 %v1672, %v1664
  %v1679 = vmul.f32 %v1358, %v1664
  %v1681 = vrot.slane %v1679, 3
  %v1683 = vadd.f32 %v1677, %v1681
  %v1684 = vrcp.pop %v1678
  %v1685 = vmul.f32 %v1683, %v1684
  %v1686 = vmax.f32 %v1685, 0.0
  %v1687 = vrot.slane %v1357, 3
  %v1689 = vmul.f32 %v1686, %v1687
  %v1691 = vrot.slane %v1689, 4
  %v1693 = vadd.f32 %v1609, %v1691
  %1694 = vst [vmem:[%s12 - $0x4] sm:$0x10] %v1693
  // Predicated region
  $region50: #{ng2a_mixer_forward.1} parent=0 // pred_check
    _
  $region51: #{ng2a_mixer_forward.1} parent=0 // pred_check_branch
    %1696 = sbr.rel (0) target = $region53
  $region52: #{ng2a_mixer_forward.1} parent=0 // pred_region
    _
  $region53: #{ng2a_mixer_forward.1} parent=0 // pred_fallthru
    _
  // Predicated region
  $region54: #{ng2a_mixer_forward.1} parent=0 // pred_check
    _
  $region55: #{ng2a_mixer_forward.1} parent=0 // pred_check_branch
    %1698 = sbr.rel (0) target = $region57
  $region56: #{ng2a_mixer_forward.1} parent=0 // pred_region
    _
  $region57: #{ng2a_mixer_forward.1} parent=0 // pred_fallthru
    _

</llo_original>
